<compile_context>
chip_gen: v7x
topology: tpu7x:2x2x1
jax: 0.10.0
libtpu: 0.0.40
codegen_flags: <defaults>
</compile_context>

<pallas_src>
import functools

import jax
import jax.numpy as jnp
from jax.experimental import pallas as pl
from jax.experimental.pallas import tpu as pltpu

DEGREE = 4            # degree+1 = 5 Chebyshev terms (T_0 folded into a bias)
NUM_CLASSES = 10
INPUT_CHANNELS = 1
IN_DIM = 28 * 28
H1, H2 = 32, 16
LN_EPS = 1e-5
DEFAULT_TB = 512      # target batch tile (rows)
VMEM_LIMIT = 48 * 1024 * 1024   # safe on v5e/v6e (128 MiB) and v7x (64 MiB)


def _round_up(x, m):
    return ((x + m - 1) // m) * m


def _cheby_terms(h):
    """Chebyshev T_1..T_DEGREE of tanh(h) in f32. Returns list of (TB, In)."""
    t = jnp.tanh(h)
    two_t = t + t                       # hoisted: one fewer VPU mul/elem/degree
    terms = [t]
    t_prev, t_cur = jnp.ones_like(t), t
    for _ in range(DEGREE - 1):
        t_next = two_t * t_cur - t_prev
        terms.append(t_next)
        t_prev, t_cur = t_cur, t_next
    return terms


def _cheby_layer_loop(h, w_ref, bias_ref):
    """Per-degree dots (layer 1, K=784). w_ref: (DEGREE, In, Out) bf16,
    bias_ref: (1, Out) f32 (folded degree-0 term)."""
    terms = _cheby_terms(h)
    acc = bias_ref[...]
    for d in range(DEGREE):
        acc = acc + jnp.dot(terms[d].astype(jnp.bfloat16), w_ref[d],
                            preferred_element_type=jnp.float32)
    return acc


def _cheby_layer_concat(h, w_ref, bias_ref):
    """Single K-concatenated dot (layers 2/3): T_cat (TB, 4*In) @ (4*In, Out).
    Replaces 4 tiny K=32/16 matmuls with one K=128/64 matmul (one MXU weight
    push, MXU-internal accumulation)."""
    t_cat = jnp.concatenate(_cheby_terms(h), axis=-1).astype(jnp.bfloat16)
    return bias_ref[...] + jnp.dot(t_cat, w_ref[...],
                                   preferred_element_type=jnp.float32)


def _layernorm(h, g_ref, b_ref):
    """PyTorch nn.LayerNorm over last dim (biased variance, eps=1e-5)."""
    mean = jnp.mean(h, axis=-1, keepdims=True)
    var = jnp.mean((h - mean) ** 2, axis=-1, keepdims=True)
    return (h - mean) * jax.lax.rsqrt(var + LN_EPS) * g_ref[...] + b_ref[...]


def model_kernel(x_ref, w1_ref, c1_ref, g1_ref, b1_ref,
                 w2_ref, c2_ref, g2_ref, b2_ref,
                 w3_ref, c3_ref, out_ref):
    h = x_ref[...]                              # (TB, 784) f32 streamed tile
    h = _cheby_layer_loop(h, w1_ref, c1_ref)    # (TB, 32)
    h = _layernorm(h, g1_ref, b1_ref)
    h = _cheby_layer_concat(h, w2_ref, c2_ref)  # (TB, 16)
    h = _layernorm(h, g2_ref, b2_ref)
    h = _cheby_layer_concat(h, w3_ref, c3_ref)  # (TB, num_classes)
    out_ref[...] = h.astype(out_ref.dtype)


def _full_spec(arr):
    """Whole-array block, resident across the batch grid (constant index_map)."""
    nd = arr.ndim
    return pl.BlockSpec(arr.shape, lambda i, _nd=nd: (0,) * _nd)


def _pick_tile(b, target):
    """Batch tile near `target` with minimal padding waste.  Tile is either a
    multiple of 8 (sublane) or equal to the full batch; >=2 grid steps for
    moderately large batches so v7x's two TensorCores both get work."""
    if b <= target:
        n_steps = 2 if b >= 256 else 1
    else:
        n_steps = pl.cdiv(b, target)
        if n_steps % 2 == 1 and b >= 256:
            n_steps += 1
    if n_steps == 1:
        return b                          # block dim == full dim: always legal
    return _round_up(pl.cdiv(b, n_steps), 8)


@functools.partial(jax.jit, static_argnames=("tb",))
def simple1d_demo_kacn(x, params, tb=None):
    """x: (B, C, 28, 28) f32 -> (B, num_classes) f32."""
    b = x.shape[0]
    x2d = x.reshape(b, -1)                # x.view(-1, 28*28); stays f32 in HBM
    assert x2d.shape[1] == IN_DIM

    w1, g1, b1, w2, g2, b2, w3 = params

    def prep(w, concat):
        # Fold T_0 == 1 into a bias; keep degrees 1..DEGREE as bf16 MXU weights.
        bias = jnp.sum(w[0], axis=0, keepdims=True).astype(jnp.float32)  # (1, Out)
        wk = w[1:]
        if concat:
            wk = wk.reshape(DEGREE * wk.shape[1], wk.shape[2])           # (4*In, Out)
        return wk.astype(jnp.bfloat16), bias

    w1k, c1 = prep(w1, concat=False)      # (4, 784, 32) bf16
    w2k, c2 = prep(w2, concat=True)       # (128, 16)    bf16
    w3k, c3 = prep(w3, concat=True)       # (64, 10)     bf16

    tile = _pick_tile(b, DEFAULT_TB if tb is None else tb)
    grid = (pl.cdiv(b, tile),)            # ragged last tile handled by Pallas

    weight_bytes = sum(int(a.size) * a.dtype.itemsize
                       for a in (w1k, c1, g1, b1, w2k, c2, g2, b2, w3k, c3))
    cost = pl.CostEstimate(
        flops=2 * b * DEGREE * (IN_DIM * H1 + H1 * H2 + H2 * NUM_CLASSES),
        transcendentals=b * (IN_DIM + H1 + H2),
        bytes_accessed=b * IN_DIM * 4 + b * NUM_CLASSES * 4 + weight_bytes,
    )

    return pl.pallas_call(
        model_kernel,
        out_shape=jax.ShapeDtypeStruct((b, NUM_CLASSES), jnp.float32),
        grid=grid,
        in_specs=[
            pl.BlockSpec((tile, IN_DIM), lambda i: (i, 0)),   # x streamed per tile
            _full_spec(w1k), _full_spec(c1), _full_spec(g1), _full_spec(b1),
            _full_spec(w2k), _full_spec(c2), _full_spec(g2), _full_spec(b2),
            _full_spec(w3k), _full_spec(c3),
        ],
        out_specs=pl.BlockSpec((tile, NUM_CLASSES), lambda i: (i, 0)),
        compiler_params=pltpu.CompilerParams(
            dimension_semantics=("parallel",),
            vmem_limit_bytes=VMEM_LIMIT,
        ),
        cost_estimate=cost,
    )(x2d, w1k, c1, g1, b1, w2k, c2, g2, b2, w3k, c3)


def init_params(key):
    """Deterministic parameter init matching ChebyKANLayer's __init__.

    PyTorch stores cheby_coeffs as (in, out, degree+1) with
    std = 1 / (in * (degree+1)); we keep the equivalent tensor as
    (degree+1, in, out) so each degree is one (In x Out) matmul."""
    k1, k2, k3 = jax.random.split(key, 3)
    dp1 = DEGREE + 1
    w1 = jax.random.normal(k1, (dp1, IN_DIM, H1), jnp.float32) / (IN_DIM * dp1)
    w2 = jax.random.normal(k2, (dp1, H1, H2), jnp.float32) / (H1 * dp1)
    w3 = jax.random.normal(k3, (dp1, H2, NUM_CLASSES), jnp.float32) / (H2 * dp1)
    g1 = jnp.ones((1, H1), jnp.float32)
    b1 = jnp.zeros((1, H1), jnp.float32)
    g2 = jnp.ones((1, H2), jnp.float32)
    b2 = jnp.zeros((1, H2), jnp.float32)
    return (w1, g1, b1, w2, g2, b2, w3)


def _cheby_ref(h, w, op_dtype):
    bias = jnp.sum(w[0], axis=0)[None, :]
    wk = w[1:].astype(op_dtype)
    t = jnp.tanh(h)
    two_t = t + t
    terms = [t]
    t_prev, t_cur = jnp.ones_like(t), t
    for _ in range(DEGREE - 1):
        t_next = two_t * t_cur - t_prev
        terms.append(t_next)
        t_prev, t_cur = t_cur, t_next
    acc = bias
    for d in range(DEGREE):
        acc = acc + jnp.dot(terms[d].astype(op_dtype), wk[d],
                            preferred_element_type=jnp.float32)
    return acc


def _ln_ref(h, g, b):
    m = jnp.mean(h, -1, keepdims=True)
    v = jnp.mean((h - m) ** 2, -1, keepdims=True)
    return (h - m) * jax.lax.rsqrt(v + LN_EPS) * g + b


def reference_forward(x, params, op_dtype=jnp.bfloat16):
    """op_dtype=bf16 mirrors the kernel's MXU numerics; op_dtype=f32 is the
    true f32 PyTorch Simple1dDemoKACN semantics."""
    w1, g1, b1, w2, g2, b2, w3 = params
    h = x.reshape(x.shape[0], -1).astype(jnp.float32)
    h = _cheby_ref(h, w1, op_dtype)
    h = _ln_ref(h, g1, b1)
    h = _cheby_ref(h, w2, op_dtype)
    h = _ln_ref(h, g2, b2)
    h = _cheby_ref(h, w3, op_dtype)
    return h


if __name__ == "__main__":
    key = jax.random.PRNGKey(0)
    kx, kp = jax.random.split(key)

    batch = 2
    x = jax.random.normal(kx, (batch, INPUT_CHANNELS, 28, 28), jnp.float32)
    params = init_params(kp)

    out = jax.block_until_ready(simple1d_demo_kacn(x, params))
    assert out.shape == (batch, NUM_CLASSES)

    # (1) Check against a reference mirroring the kernel's bf16-MXU numerics.
    ref_bf16 = reference_forward(x, params, op_dtype=jnp.bfloat16)
    assert jnp.allclose(out, ref_bf16, atol=5e-3, rtol=5e-3), (
        f"bf16-ref max abs err {jnp.max(jnp.abs(out - ref_bf16))}")

    # (2) Looser check against the true f32 module semantics to bound the
    #     bf16 weight/operand rounding error.
    ref_f32 = reference_forward(x, params, op_dtype=jnp.float32)
    assert jnp.allclose(out, ref_f32, atol=3e-2, rtol=3e-2), (
        f"f32-ref max abs err {jnp.max(jnp.abs(out - ref_f32))}")

    print("KERNEL_OK")
</pallas_src>

<mosaic_0001>
module attributes {stable_mosaic.version = 11 : i64} {
  func.func @model_kernel(%arg0: i32, %arg1: memref<2x784xf32, #tpu.memory_space<vmem>>, %arg2: memref<4x784x32xbf16, #tpu.memory_space<vmem>>, %arg3: memref<1x32xf32, #tpu.memory_space<vmem>>, %arg4: memref<1x32xf32, #tpu.memory_space<vmem>>, %arg5: memref<1x32xf32, #tpu.memory_space<vmem>>, %arg6: memref<128x16xbf16, #tpu.memory_space<vmem>>, %arg7: memref<1x16xf32, #tpu.memory_space<vmem>>, %arg8: memref<1x16xf32, #tpu.memory_space<vmem>>, %arg9: memref<1x16xf32, #tpu.memory_space<vmem>>, %arg10: memref<64x10xbf16, #tpu.memory_space<vmem>>, %arg11: memref<1x10xf32, #tpu.memory_space<vmem>>, %arg12: memref<2x10xf32, #tpu.memory_space<vmem>>) attributes {dimension_semantics = [#tpu.dimension_semantics<parallel>], iteration_bounds = array<i64: 1>, scalar_prefetch = 0 : i64, scratch_operands = 0 : i64, tpu.core_type = #tpu.core_type<tc>, window_params = [{transform_indices = @transform_0, window_bounds = array<i64: 2, 784>}, {pipeline_mode = #tpu.pipeline_mode<synchronous>, transform_indices = @transform_1, window_bounds = array<i64: 4, 784, 32>}, {pipeline_mode = #tpu.pipeline_mode<synchronous>, transform_indices = @transform_2, window_bounds = array<i64: 1, 32>}, {pipeline_mode = #tpu.pipeline_mode<synchronous>, transform_indices = @transform_3, window_bounds = array<i64: 1, 32>}, {pipeline_mode = #tpu.pipeline_mode<synchronous>, transform_indices = @transform_4, window_bounds = array<i64: 1, 32>}, {pipeline_mode = #tpu.pipeline_mode<synchronous>, transform_indices = @transform_5, window_bounds = array<i64: 128, 16>}, {pipeline_mode = #tpu.pipeline_mode<synchronous>, transform_indices = @transform_6, window_bounds = array<i64: 1, 16>}, {pipeline_mode = #tpu.pipeline_mode<synchronous>, transform_indices = @transform_7, window_bounds = array<i64: 1, 16>}, {pipeline_mode = #tpu.pipeline_mode<synchronous>, transform_indices = @transform_8, window_bounds = array<i64: 1, 16>}, {pipeline_mode = #tpu.pipeline_mode<synchronous>, transform_indices = @transform_9, window_bounds = array<i64: 64, 10>}, {pipeline_mode = #tpu.pipeline_mode<synchronous>, transform_indices = @transform_10, window_bounds = array<i64: 1, 10>}, {transform_indices = @transform_11, window_bounds = array<i64: 2, 10>}]} {
    %c0 = arith.constant 0 : index
    %c0_0 = arith.constant 0 : index
    %0 = vector.load %arg1[%c0, %c0_0] : memref<2x784xf32, #tpu.memory_space<vmem>>, vector<2x784xf32>
    %1 = math.tanh %0 : vector<2x784xf32>
    %2 = arith.addf %1, %1 : vector<2x784xf32>
    %cst = arith.constant 1.000000e+00 : f32
    %3 = vector.broadcast %cst : f32 to vector<2x784xf32>
    %4 = arith.mulf %2, %1 : vector<2x784xf32>
    %5 = arith.subf %4, %3 : vector<2x784xf32>
    %6 = arith.mulf %2, %5 : vector<2x784xf32>
    %7 = arith.subf %6, %1 : vector<2x784xf32>
    %8 = arith.mulf %2, %7 : vector<2x784xf32>
    %9 = arith.subf %8, %5 : vector<2x784xf32>
    %c0_1 = arith.constant 0 : index
    %c0_2 = arith.constant 0 : index
    %10 = vector.load %arg3[%c0_1, %c0_2] : memref<1x32xf32, #tpu.memory_space<vmem>>, vector<1x32xf32>
    %11 = arith.truncf %1 : vector<2x784xf32> to vector<2x784xbf16>
    %c0_3 = arith.constant 0 : index
    %c0_4 = arith.constant 0 : index
    %c0_5 = arith.constant 0 : index
    %12 = vector.load %arg2[%c0_3, %c0_4, %c0_5] : memref<4x784x32xbf16, #tpu.memory_space<vmem>>, vector<1x784x32xbf16>
    %13 = vector.shape_cast %12 : vector<1x784x32xbf16> to vector<784x32xbf16>
    %cst_6 = arith.constant dense<0.000000e+00> : vector<2x32xf32>
    %14 = tpu.matmul %11, %13, %cst_6 {dimension_numbers = #tpu.dot_dimension_numbers<[1], [0], [0], [1], [0, 0, 1, 1], [], []>} : vector<2x784xbf16>, vector<784x32xbf16>, vector<2x32xf32> -> vector<2x32xf32>
    %15 = vector.broadcast %10 : vector<1x32xf32> to vector<2x32xf32>
    %16 = arith.addf %15, %14 : vector<2x32xf32>
    %17 = arith.truncf %5 : vector<2x784xf32> to vector<2x784xbf16>
    %c1 = arith.constant 1 : index
    %c0_7 = arith.constant 0 : index
    %c0_8 = arith.constant 0 : index
    %18 = vector.load %arg2[%c1, %c0_7, %c0_8] : memref<4x784x32xbf16, #tpu.memory_space<vmem>>, vector<1x784x32xbf16>
    %19 = vector.shape_cast %18 : vector<1x784x32xbf16> to vector<784x32xbf16>
    %cst_9 = arith.constant dense<0.000000e+00> : vector<2x32xf32>
    %20 = tpu.matmul %17, %19, %cst_9 {dimension_numbers = #tpu.dot_dimension_numbers<[1], [0], [0], [1], [0, 0, 1, 1], [], []>} : vector<2x784xbf16>, vector<784x32xbf16>, vector<2x32xf32> -> vector<2x32xf32>
    %21 = arith.addf %16, %20 : vector<2x32xf32>
    %22 = arith.truncf %7 : vector<2x784xf32> to vector<2x784xbf16>
    %c2 = arith.constant 2 : index
    %c0_10 = arith.constant 0 : index
    %c0_11 = arith.constant 0 : index
    %23 = vector.load %arg2[%c2, %c0_10, %c0_11] : memref<4x784x32xbf16, #tpu.memory_space<vmem>>, vector<1x784x32xbf16>
    %24 = vector.shape_cast %23 : vector<1x784x32xbf16> to vector<784x32xbf16>
    %cst_12 = arith.constant dense<0.000000e+00> : vector<2x32xf32>
    %25 = tpu.matmul %22, %24, %cst_12 {dimension_numbers = #tpu.dot_dimension_numbers<[1], [0], [0], [1], [0, 0, 1, 1], [], []>} : vector<2x784xbf16>, vector<784x32xbf16>, vector<2x32xf32> -> vector<2x32xf32>
    %26 = arith.addf %21, %25 : vector<2x32xf32>
    %27 = arith.truncf %9 : vector<2x784xf32> to vector<2x784xbf16>
    %c3 = arith.constant 3 : index
    %c0_13 = arith.constant 0 : index
    %c0_14 = arith.constant 0 : index
    %28 = vector.load %arg2[%c3, %c0_13, %c0_14] : memref<4x784x32xbf16, #tpu.memory_space<vmem>>, vector<1x784x32xbf16>
    %29 = vector.shape_cast %28 : vector<1x784x32xbf16> to vector<784x32xbf16>
    %cst_15 = arith.constant dense<0.000000e+00> : vector<2x32xf32>
    %30 = tpu.matmul %27, %29, %cst_15 {dimension_numbers = #tpu.dot_dimension_numbers<[1], [0], [0], [1], [0, 0, 1, 1], [], []>} : vector<2x784xbf16>, vector<784x32xbf16>, vector<2x32xf32> -> vector<2x32xf32>
    %31 = arith.addf %26, %30 : vector<2x32xf32>
    %cst_16 = arith.constant dense<0.000000e+00> : vector<2xf32>
    %32 = vector.multi_reduction <add>, %31, %cst_16 [1] : vector<2x32xf32> to vector<2xf32>
    %33 = vector.shape_cast %32 : vector<2xf32> to vector<2x1xf32>
    %cst_17 = arith.constant 3.200000e+01 : f32
    %34 = vector.broadcast %cst_17 : f32 to vector<2x1xf32>
    %35 = arith.divf %33, %34 : vector<2x1xf32>
    %36 = vector.broadcast %35 : vector<2x1xf32> to vector<2x32xf32>
    %37 = arith.subf %31, %36 : vector<2x32xf32>
    %38 = arith.mulf %37, %37 : vector<2x32xf32>
    %cst_18 = arith.constant dense<0.000000e+00> : vector<2xf32>
    %39 = vector.multi_reduction <add>, %38, %cst_18 [1] : vector<2x32xf32> to vector<2xf32>
    %40 = vector.shape_cast %39 : vector<2xf32> to vector<2x1xf32>
    %cst_19 = arith.constant 3.200000e+01 : f32
    %41 = vector.broadcast %cst_19 : f32 to vector<2x1xf32>
    %42 = arith.divf %40, %41 : vector<2x1xf32>
    %43 = vector.broadcast %35 : vector<2x1xf32> to vector<2x32xf32>
    %44 = arith.subf %31, %43 : vector<2x32xf32>
    %cst_20 = arith.constant 9.99999974E-6 : f32
    %45 = vector.broadcast %cst_20 : f32 to vector<2x1xf32>
    %46 = arith.addf %42, %45 : vector<2x1xf32>
    %47 = math.rsqrt %46 : vector<2x1xf32>
    %48 = vector.broadcast %47 : vector<2x1xf32> to vector<2x32xf32>
    %49 = arith.mulf %44, %48 : vector<2x32xf32>
    %c0_21 = arith.constant 0 : index
    %c0_22 = arith.constant 0 : index
    %50 = vector.load %arg4[%c0_21, %c0_22] : memref<1x32xf32, #tpu.memory_space<vmem>>, vector<1x32xf32>
    %51 = vector.broadcast %50 : vector<1x32xf32> to vector<2x32xf32>
    %52 = arith.mulf %49, %51 : vector<2x32xf32>
    %c0_23 = arith.constant 0 : index
    %c0_24 = arith.constant 0 : index
    %53 = vector.load %arg5[%c0_23, %c0_24] : memref<1x32xf32, #tpu.memory_space<vmem>>, vector<1x32xf32>
    %54 = vector.broadcast %53 : vector<1x32xf32> to vector<2x32xf32>
    %55 = arith.addf %52, %54 : vector<2x32xf32>
    %56 = math.tanh %55 : vector<2x32xf32>
    %57 = arith.addf %56, %56 : vector<2x32xf32>
    %cst_25 = arith.constant 1.000000e+00 : f32
    %58 = vector.broadcast %cst_25 : f32 to vector<2x32xf32>
    %59 = arith.mulf %57, %56 : vector<2x32xf32>
    %60 = arith.subf %59, %58 : vector<2x32xf32>
    %61 = arith.mulf %57, %60 : vector<2x32xf32>
    %62 = arith.subf %61, %56 : vector<2x32xf32>
    %63 = arith.mulf %57, %62 : vector<2x32xf32>
    %64 = arith.subf %63, %60 : vector<2x32xf32>
    %65 = tpu.concatenate %56, %60, %62, %64 in 1 : vector<2x32xf32>, vector<2x32xf32>, vector<2x32xf32>, vector<2x32xf32> -> vector<2x128xf32>
    %66 = arith.truncf %65 : vector<2x128xf32> to vector<2x128xbf16>
    %c0_26 = arith.constant 0 : index
    %c0_27 = arith.constant 0 : index
    %67 = vector.load %arg7[%c0_26, %c0_27] : memref<1x16xf32, #tpu.memory_space<vmem>>, vector<1x16xf32>
    %c0_28 = arith.constant 0 : index
    %c0_29 = arith.constant 0 : index
    %68 = vector.load %arg6[%c0_28, %c0_29] : memref<128x16xbf16, #tpu.memory_space<vmem>>, vector<128x16xbf16>
    %cst_30 = arith.constant dense<0.000000e+00> : vector<2x16xf32>
    %69 = tpu.matmul %66, %68, %cst_30 {dimension_numbers = #tpu.dot_dimension_numbers<[1], [0], [0], [1], [0, 0, 1, 1], [], []>} : vector<2x128xbf16>, vector<128x16xbf16>, vector<2x16xf32> -> vector<2x16xf32>
    %70 = vector.broadcast %67 : vector<1x16xf32> to vector<2x16xf32>
    %71 = arith.addf %70, %69 : vector<2x16xf32>
    %cst_31 = arith.constant dense<0.000000e+00> : vector<2xf32>
    %72 = vector.multi_reduction <add>, %71, %cst_31 [1] : vector<2x16xf32> to vector<2xf32>
    %73 = vector.shape_cast %72 : vector<2xf32> to vector<2x1xf32>
    %cst_32 = arith.constant 1.600000e+01 : f32
    %74 = vector.broadcast %cst_32 : f32 to vector<2x1xf32>
    %75 = arith.divf %73, %74 : vector<2x1xf32>
    %76 = vector.broadcast %75 : vector<2x1xf32> to vector<2x16xf32>
    %77 = arith.subf %71, %76 : vector<2x16xf32>
    %78 = arith.mulf %77, %77 : vector<2x16xf32>
    %cst_33 = arith.constant dense<0.000000e+00> : vector<2xf32>
    %79 = vector.multi_reduction <add>, %78, %cst_33 [1] : vector<2x16xf32> to vector<2xf32>
    %80 = vector.shape_cast %79 : vector<2xf32> to vector<2x1xf32>
    %cst_34 = arith.constant 1.600000e+01 : f32
    %81 = vector.broadcast %cst_34 : f32 to vector<2x1xf32>
    %82 = arith.divf %80, %81 : vector<2x1xf32>
    %83 = vector.broadcast %75 : vector<2x1xf32> to vector<2x16xf32>
    %84 = arith.subf %71, %83 : vector<2x16xf32>
    %cst_35 = arith.constant 9.99999974E-6 : f32
    %85 = vector.broadcast %cst_35 : f32 to vector<2x1xf32>
    %86 = arith.addf %82, %85 : vector<2x1xf32>
    %87 = math.rsqrt %86 : vector<2x1xf32>
    %88 = vector.broadcast %87 : vector<2x1xf32> to vector<2x16xf32>
    %89 = arith.mulf %84, %88 : vector<2x16xf32>
    %c0_36 = arith.constant 0 : index
    %c0_37 = arith.constant 0 : index
    %90 = vector.load %arg8[%c0_36, %c0_37] : memref<1x16xf32, #tpu.memory_space<vmem>>, vector<1x16xf32>
    %91 = vector.broadcast %90 : vector<1x16xf32> to vector<2x16xf32>
    %92 = arith.mulf %89, %91 : vector<2x16xf32>
    %c0_38 = arith.constant 0 : index
    %c0_39 = arith.constant 0 : index
    %93 = vector.load %arg9[%c0_38, %c0_39] : memref<1x16xf32, #tpu.memory_space<vmem>>, vector<1x16xf32>
    %94 = vector.broadcast %93 : vector<1x16xf32> to vector<2x16xf32>
    %95 = arith.addf %92, %94 : vector<2x16xf32>
    %96 = math.tanh %95 : vector<2x16xf32>
    %97 = arith.addf %96, %96 : vector<2x16xf32>
    %cst_40 = arith.constant 1.000000e+00 : f32
    %98 = vector.broadcast %cst_40 : f32 to vector<2x16xf32>
    %99 = arith.mulf %97, %96 : vector<2x16xf32>
    %100 = arith.subf %99, %98 : vector<2x16xf32>
    %101 = arith.mulf %97, %100 : vector<2x16xf32>
    %102 = arith.subf %101, %96 : vector<2x16xf32>
    %103 = arith.mulf %97, %102 : vector<2x16xf32>
    %104 = arith.subf %103, %100 : vector<2x16xf32>
    %105 = tpu.concatenate %96, %100, %102, %104 in 1 : vector<2x16xf32>, vector<2x16xf32>, vector<2x16xf32>, vector<2x16xf32> -> vector<2x64xf32>
    %106 = arith.truncf %105 : vector<2x64xf32> to vector<2x64xbf16>
    %c0_41 = arith.constant 0 : index
    %c0_42 = arith.constant 0 : index
    %107 = vector.load %arg11[%c0_41, %c0_42] : memref<1x10xf32, #tpu.memory_space<vmem>>, vector<1x10xf32>
    %c0_43 = arith.constant 0 : index
    %c0_44 = arith.constant 0 : index
    %108 = vector.load %arg10[%c0_43, %c0_44] : memref<64x10xbf16, #tpu.memory_space<vmem>>, vector<64x10xbf16>
    %cst_45 = arith.constant dense<0.000000e+00> : vector<2x10xf32>
    %109 = tpu.matmul %106, %108, %cst_45 {dimension_numbers = #tpu.dot_dimension_numbers<[1], [0], [0], [1], [0, 0, 1, 1], [], []>} : vector<2x64xbf16>, vector<64x10xbf16>, vector<2x10xf32> -> vector<2x10xf32>
    %110 = vector.broadcast %107 : vector<1x10xf32> to vector<2x10xf32>
    %111 = arith.addf %110, %109 : vector<2x10xf32>
    %c0_46 = arith.constant 0 : index
    %c0_47 = arith.constant 0 : index
    %112 = vector.load %arg12[%c0_46, %c0_47] : memref<2x10xf32, #tpu.memory_space<vmem>>, vector<2x10xf32>
    tpu.vector_store %arg12[%c0_46, %c0_47], %111 {strides = array<i32>} : memref<2x10xf32, #tpu.memory_space<vmem>>, vector<2x10xf32>,
    return
  }
  func.func @transform_0(%arg0: i32) -> (i32, i32) {
    %c0_i32 = arith.constant 0 : i32
    %c0_i32_0 = arith.constant 0 : i32
    return %arg0, %c0_i32 : i32, i32
  }
  func.func @transform_1(%arg0: i32) -> (i32, i32, i32) {
    %c0_i32 = arith.constant 0 : i32
    %c0_i32_0 = arith.constant 0 : i32
    %c0_i32_1 = arith.constant 0 : i32
    %c0_i32_2 = arith.constant 0 : i32
    return %c0_i32, %c0_i32_0, %c0_i32_1 : i32, i32, i32
  }
  func.func @transform_2(%arg0: i32) -> (i32, i32) {
    %c0_i32 = arith.constant 0 : i32
    %c0_i32_0 = arith.constant 0 : i32
    %c0_i32_1 = arith.constant 0 : i32
    return %c0_i32, %c0_i32_0 : i32, i32
  }
  func.func @transform_3(%arg0: i32) -> (i32, i32) {
    %c0_i32 = arith.constant 0 : i32
    %c0_i32_0 = arith.constant 0 : i32
    %c0_i32_1 = arith.constant 0 : i32
    return %c0_i32, %c0_i32_0 : i32, i32
  }
  func.func @transform_4(%arg0: i32) -> (i32, i32) {
    %c0_i32 = arith.constant 0 : i32
    %c0_i32_0 = arith.constant 0 : i32
    %c0_i32_1 = arith.constant 0 : i32
    return %c0_i32, %c0_i32_0 : i32, i32
  }
  func.func @transform_5(%arg0: i32) -> (i32, i32) {
    %c0_i32 = arith.constant 0 : i32
    %c0_i32_0 = arith.constant 0 : i32
    %c0_i32_1 = arith.constant 0 : i32
    return %c0_i32, %c0_i32_0 : i32, i32
  }
  func.func @transform_6(%arg0: i32) -> (i32, i32) {
    %c0_i32 = arith.constant 0 : i32
    %c0_i32_0 = arith.constant 0 : i32
    %c0_i32_1 = arith.constant 0 : i32
    return %c0_i32, %c0_i32_0 : i32, i32
  }
  func.func @transform_7(%arg0: i32) -> (i32, i32) {
    %c0_i32 = arith.constant 0 : i32
    %c0_i32_0 = arith.constant 0 : i32
    %c0_i32_1 = arith.constant 0 : i32
    return %c0_i32, %c0_i32_0 : i32, i32
  }
  func.func @transform_8(%arg0: i32) -> (i32, i32) {
    %c0_i32 = arith.constant 0 : i32
    %c0_i32_0 = arith.constant 0 : i32
    %c0_i32_1 = arith.constant 0 : i32
    return %c0_i32, %c0_i32_0 : i32, i32
  }
  func.func @transform_9(%arg0: i32) -> (i32, i32) {
    %c0_i32 = arith.constant 0 : i32
    %c0_i32_0 = arith.constant 0 : i32
    %c0_i32_1 = arith.constant 0 : i32
    return %c0_i32, %c0_i32_0 : i32, i32
  }
  func.func @transform_10(%arg0: i32) -> (i32, i32) {
    %c0_i32 = arith.constant 0 : i32
    %c0_i32_0 = arith.constant 0 : i32
    %c0_i32_1 = arith.constant 0 : i32
    return %c0_i32, %c0_i32_0 : i32, i32
  }
  func.func @transform_11(%arg0: i32) -> (i32, i32) {
    %c0_i32 = arith.constant 0 : i32
    %c0_i32_0 = arith.constant 0 : i32
    return %arg0, %c0_i32 : i32, i32
  }
}

</mosaic_0001>

<llo_original>
// kernel: simple1d_demo_kacn.1
$region0: #{simple1d_demo_kacn.1}
  #allocation0 [shape = 'u32[]', space=smem, size = 0x4, offset = 0x4, fixed_abs, tag = 'smem constant byte address 0x4 - core index']
  #allocation1 [shape = 'u32[144,128]{1,0:T(1,128)}', space=vmem, size = 0x12000, scoped, tag = 'internal scratch']
  %s0 = inlined_call_operand.vmem [shape: f32[2,784], index: 0, kind: input, shape index: {}]
  %s1 = inlined_call_operand.vmem [shape: bf16[4,784,32], index: 1, kind: input, shape index: {}]
  %s2 = inlined_call_operand.vmem [shape: f32[1,32], index: 2, kind: input, shape index: {}]
  %s3 = inlined_call_operand.vmem [shape: f32[1,32], index: 3, kind: input, shape index: {}]
  %s4 = inlined_call_operand.vmem [shape: f32[1,32], index: 4, kind: input, shape index: {}]
  %s5 = inlined_call_operand.vmem [shape: bf16[128,16], index: 5, kind: input, shape index: {}]
  %s6 = inlined_call_operand.vmem [shape: f32[1,16], index: 6, kind: input, shape index: {}]
  %s7 = inlined_call_operand.vmem [shape: f32[1,16], index: 7, kind: input, shape index: {}]
  %s8 = inlined_call_operand.vmem [shape: f32[1,16], index: 8, kind: input, shape index: {}]
  %s9 = inlined_call_operand.vmem [shape: bf16[64,10], index: 9, kind: input, shape index: {}]
  %s10 = inlined_call_operand.vmem [shape: f32[1,10], index: 10, kind: input, shape index: {}]
  %s11 = inlined_call_operand.hbm [shape: f32[2,10], index: 11, kind: output, shape index: {}]
  %s12 = sld [smem:[#allocation0]]
  $region54: #{simple1d_demo_kacn.1} parent=0
    _
  %s14 = ssub.s32 1, %s12
  %s15 = scalar_select 0, %s14, %s12
  $region1: #{simple1d_demo_kacn.1} parent=0
    #allocation2 [shape = 'u8[1024]{0}', space=vmem, size = 0x400, scoped, tag = 'output window, operand 0, single buffered']
    #allocation3 [shape = 's32[1]{0}', space=sflag, size = 0x4, scoped, tag = 'scoped memory for simple1d_demo_kacn.1']
    %16 = vsyncpa [#allocation3], 0
    // Predicated region
    $region2: #{simple1d_demo_kacn.1} parent=1 // pred_check
      _
    $region3: #{simple1d_demo_kacn.1} parent=1 // pred_check_branch
      %18 = sbr.rel (0) target = $region5
    $region4: #{simple1d_demo_kacn.1} parent=1 // pred_region
      _
    $region5: #{simple1d_demo_kacn.1} parent=1 // pred_fallthru
      _
    // Predicated region
    $region6: #{simple1d_demo_kacn.1} parent=1 // pred_check
      _
    $region7: #{simple1d_demo_kacn.1} parent=1 // pred_check_branch
      %20 = sbr.rel (0) target = $region9
    $region8: #{simple1d_demo_kacn.1} parent=1 // pred_region
      _
    $region9: #{simple1d_demo_kacn.1} parent=1 // pred_fallthru
      _
    // Predicated region
    $region10: #{simple1d_demo_kacn.1} parent=1 // pred_check
      _
    $region11: #{simple1d_demo_kacn.1} parent=1 // pred_check_branch
      %22 = sbr.rel (0) target = $region13
    $region12: #{simple1d_demo_kacn.1} parent=1 // pred_region
      _
    $region13: #{simple1d_demo_kacn.1} parent=1 // pred_fallthru
      _
    // Predicated region
    $region14: #{simple1d_demo_kacn.1} parent=1 // pred_check
      _
    $region15: #{simple1d_demo_kacn.1} parent=1 // pred_check_branch
      %24 = sbr.rel (0) target = $region17
    $region16: #{simple1d_demo_kacn.1} parent=1 // pred_region
      _
    $region17: #{simple1d_demo_kacn.1} parent=1 // pred_fallthru
      _
    // Predicated region
    $region18: #{simple1d_demo_kacn.1} parent=1 // pred_check
      _
    $region19: #{simple1d_demo_kacn.1} parent=1 // pred_check_branch
      %26 = sbr.rel (0) target = $region21
    $region20: #{simple1d_demo_kacn.1} parent=1 // pred_region
      _
    $region21: #{simple1d_demo_kacn.1} parent=1 // pred_fallthru
      _
    // Predicated region
    $region22: #{simple1d_demo_kacn.1} parent=1 // pred_check
      _
    $region23: #{simple1d_demo_kacn.1} parent=1 // pred_check_branch
      %28 = sbr.rel (0) target = $region25
    $region24: #{simple1d_demo_kacn.1} parent=1 // pred_region
      _
    $region25: #{simple1d_demo_kacn.1} parent=1 // pred_fallthru
      _
    // Predicated region
    $region26: #{simple1d_demo_kacn.1} parent=1 // pred_check
      _
    $region27: #{simple1d_demo_kacn.1} parent=1 // pred_check_branch
      %30 = sbr.rel (0) target = $region29
    $region28: #{simple1d_demo_kacn.1} parent=1 // pred_region
      _
    $region29: #{simple1d_demo_kacn.1} parent=1 // pred_fallthru
      _
    // Predicated region
    $region30: #{simple1d_demo_kacn.1} parent=1 // pred_check
      _
    $region31: #{simple1d_demo_kacn.1} parent=1 // pred_check_branch
      %32 = sbr.rel (0) target = $region33
    $region32: #{simple1d_demo_kacn.1} parent=1 // pred_region
      _
    $region33: #{simple1d_demo_kacn.1} parent=1 // pred_fallthru
      _
    // Predicated region
    $region34: #{simple1d_demo_kacn.1} parent=1 // pred_check
      _
    $region35: #{simple1d_demo_kacn.1} parent=1 // pred_check_branch
      %34 = sbr.rel (0) target = $region37
    $region36: #{simple1d_demo_kacn.1} parent=1 // pred_region
      _
    $region37: #{simple1d_demo_kacn.1} parent=1 // pred_fallthru
      _
    // Predicated region
    $region38: #{simple1d_demo_kacn.1} parent=1 // pred_check
      _
    $region39: #{simple1d_demo_kacn.1} parent=1 // pred_check_branch
      %36 = sbr.rel (0) target = $region41
    $region40: #{simple1d_demo_kacn.1} parent=1 // pred_region
      _
    $region41: #{simple1d_demo_kacn.1} parent=1 // pred_fallthru
      _
    // Predicated region
    $region42: #{simple1d_demo_kacn.1} parent=1 // pred_check
      _
    $region43: #{simple1d_demo_kacn.1} parent=1 // pred_check_branch
      %38 = sbr.rel (0) target = $region45
    $region44: #{simple1d_demo_kacn.1} parent=1 // pred_region
      _
    $region45: #{simple1d_demo_kacn.1} parent=1 // pred_fallthru
      _
    %v40 = vld [vmem:[%s0] sm:$0xff]
    %v41 = vld [vmem:[%s0 + $0x8] sm:$0x3f]
    %v42 = vtanh.pop %v40
    %v43 = vtanh.pop %v41
    %v44 = vadd.f32 %v42, %v42
    %v45 = vadd.f32 %v43, %v43
    %v46 = vmul.f32 %v44, %v42
    %v47 = vmul.f32 %v45, %v43
    %v48 = vsub.f32 %v46, 1.0
    %v49 = vsub.f32 %v47, 1.0
    %v50 = vmul.f32 %v44, %v48
    %v51 = vmul.f32 %v45, %v49
    %v52 = vsub.f32 %v50, %v42
    %v53 = vsub.f32 %v51, %v43
    %v54 = vmul.f32 %v44, %v52
    %v55 = vmul.f32 %v45, %v53
    %v56 = vsub.f32 %v54, %v48
    %v57 = vsub.f32 %v55, %v49
    %v58 = vld [vmem:[%s2] sm:$0x1]
    %v61 = vcombine.high %v42, %v42
    %v63 = vunpack.c.l.s4 1983009808
    %v64 = vunpack.c.0.s8 %v63
    %v65 = vlaneseq
    %v66 = vshrl.u32 %v65, 7
    %v67 = vsub.s32 %v64, %v66
    %v68 = vrot.slane %v42, %v67
    %v70 = vunpack.c.l.s4 1983009808
    %v71 = vunpack.c.0.s8 %v70
    %v72 = vlaneseq
    %v73 = vshrl.u32 %v72, 7
    %v74 = vsub.s32 %v71, %v73
    %v75 = vrot.slane %v61, %v74
    %v76 = vcombine.high %v68, %v68
    %v77 = vcombine.high %v75, %v75
    %v78 = vcombine.high %v43, %v43
    %v80 = vunpack.c.l.s4 1983009808
    %v81 = vunpack.c.0.s8 %v80
    %v82 = vlaneseq
    %v83 = vshrl.u32 %v82, 7
    %v84 = vsub.s32 %v81, %v83
    %v85 = vrot.slane %v43, %v84
    %v87 = vunpack.c.l.s4 1983009808
    %v88 = vunpack.c.0.s8 %v87
    %v89 = vlaneseq
    %v90 = vshrl.u32 %v89, 7
    %v91 = vsub.s32 %v88, %v90
    %v92 = vrot.slane %v78, %v91
    %v93 = vcombine.high %v85, %v85
    %v101 = vpack.c.bf16 %v68, %v68
    %v102 = vpack.c.bf16 %v76, %v76
    %v103 = vpack.c.bf16 %v75, %v75
    %v104 = vpack.c.bf16 %v77, %v77
    %v105 = vpack.c.bf16 %v85, %v85
    %v106 = vpack.c.bf16 %v93, %v93
    %v107 = vpack.c.bf16 %v92, %v92
    %v108 = vld [vmem:[%s1] sm:$0xf]
    %v109 = vld [vmem:[%s1 + $0x4] sm:$0xf]
    %v110 = vld [vmem:[%s1 + $0x8] sm:$0xf]
    %v111 = vld [vmem:[%s1 + $0xc] sm:$0xf]
    %v112 = vld [vmem:[%s1 + $0x10] sm:$0xf]
    %v113 = vld [vmem:[%s1 + $0x14] sm:$0xf]
    %v114 = vld [vmem:[%s1 + $0x18] sm:$0xf]
    %v115 = vld [vmem:[%s1 + $0x1c] sm:$0xf]
    %v116 = vld [vmem:[%s1 + $0x20] sm:$0xf]
    %v117 = vld [vmem:[%s1 + $0x24] sm:$0xf]
    %v118 = vld [vmem:[%s1 + $0x28] sm:$0xf]
    %v119 = vld [vmem:[%s1 + $0x2c] sm:$0xf]
    %v120 = vld [vmem:[%s1 + $0x30] sm:$0xf]
    %v121 = vld [vmem:[%s1 + $0x34] sm:$0xf]
    %v122 = vld [vmem:[%s1 + $0x38] sm:$0xf]
    %v123 = vld [vmem:[%s1 + $0x3c] sm:$0xf]
    %v124 = vld [vmem:[%s1 + $0x40] sm:$0xf]
    %v125 = vld [vmem:[%s1 + $0x44] sm:$0xf]
    %v126 = vld [vmem:[%s1 + $0x48] sm:$0xf]
    %v127 = vld [vmem:[%s1 + $0x4c] sm:$0xf]
    %v128 = vld [vmem:[%s1 + $0x50] sm:$0xf]
    %v129 = vld [vmem:[%s1 + $0x54] sm:$0xf]
    %v130 = vld [vmem:[%s1 + $0x58] sm:$0xf]
    %v131 = vld [vmem:[%s1 + $0x5c] sm:$0xf]
    %v132 = vld [vmem:[%s1 + $0x60] sm:$0xf]
    %v133 = vld [vmem:[%s1 + $0x64] sm:$0xf]
    %v134 = vld [vmem:[%s1 + $0x68] sm:$0xf]
    %v135 = vld [vmem:[%s1 + $0x6c] sm:$0xf]
    %v136 = vld [vmem:[%s1 + $0x70] sm:$0xf]
    %v137 = vld [vmem:[%s1 + $0x74] sm:$0xf]
    %v138 = vld [vmem:[%s1 + $0x78] sm:$0xf]
    %v139 = vld [vmem:[%s1 + $0x7c] sm:$0xf]
    %v140 = vld [vmem:[%s1 + $0x80] sm:$0xf]
    %v141 = vld [vmem:[%s1 + $0x84] sm:$0xf]
    %v142 = vld [vmem:[%s1 + $0x88] sm:$0xf]
    %v143 = vld [vmem:[%s1 + $0x8c] sm:$0xf]
    %v144 = vld [vmem:[%s1 + $0x90] sm:$0xf]
    %v145 = vld [vmem:[%s1 + $0x94] sm:$0xf]
    %v146 = vld [vmem:[%s1 + $0x98] sm:$0xf]
    %v147 = vld [vmem:[%s1 + $0x9c] sm:$0xf]
    %v148 = vld [vmem:[%s1 + $0xa0] sm:$0xf]
    %v149 = vld [vmem:[%s1 + $0xa4] sm:$0xf]
    %v150 = vld [vmem:[%s1 + $0xa8] sm:$0xf]
    %v151 = vld [vmem:[%s1 + $0xac] sm:$0xf]
    %v152 = vld [vmem:[%s1 + $0xb0] sm:$0xf]
    %v153 = vld [vmem:[%s1 + $0xb4] sm:$0xf]
    %v154 = vld [vmem:[%s1 + $0xb8] sm:$0xf]
    %v155 = vld [vmem:[%s1 + $0xbc] sm:$0xf]
    %v156 = vld [vmem:[%s1 + $0xc0] sm:$0xf]
    %v157 = vld [vmem:[%s1 + $0xc4] sm:$0xf]
    %v158 = vld [vmem:[%s1 + $0xc8] sm:$0xf]
    %v159 = vld [vmem:[%s1 + $0xcc] sm:$0xf]
    %v160 = vld [vmem:[%s1 + $0xd0] sm:$0xf]
    %v161 = vld [vmem:[%s1 + $0xd4] sm:$0xf]
    %v162 = vld [vmem:[%s1 + $0xd8] sm:$0xf]
    %v163 = vld [vmem:[%s1 + $0xdc] sm:$0xf]
    %v164 = vld [vmem:[%s1 + $0xe0] sm:$0xf]
    %v165 = vld [vmem:[%s1 + $0xe4] sm:$0xf]
    %v166 = vld [vmem:[%s1 + $0xe8] sm:$0xf]
    %v167 = vld [vmem:[%s1 + $0xec] sm:$0xf]
    %v168 = vld [vmem:[%s1 + $0xf0] sm:$0xf]
    %v169 = vld [vmem:[%s1 + $0xf4] sm:$0xf]
    %v170 = vld [vmem:[%s1 + $0xf8] sm:$0xf]
    %v171 = vld [vmem:[%s1 + $0xfc] sm:$0xf]
    %v172 = vld [vmem:[%s1 + $0x100] sm:$0xf]
    %v173 = vld [vmem:[%s1 + $0x104] sm:$0xf]
    %v174 = vld [vmem:[%s1 + $0x108] sm:$0xf]
    %v175 = vld [vmem:[%s1 + $0x10c] sm:$0xf]
    %v176 = vld [vmem:[%s1 + $0x110] sm:$0xf]
    %v177 = vld [vmem:[%s1 + $0x114] sm:$0xf]
    %v178 = vld [vmem:[%s1 + $0x118] sm:$0xf]
    %v179 = vld [vmem:[%s1 + $0x11c] sm:$0xf]
    %v180 = vld [vmem:[%s1 + $0x120] sm:$0xf]
    %v181 = vld [vmem:[%s1 + $0x124] sm:$0xf]
    %v182 = vld [vmem:[%s1 + $0x128] sm:$0xf]
    %v183 = vld [vmem:[%s1 + $0x12c] sm:$0xf]
    %v184 = vld [vmem:[%s1 + $0x130] sm:$0xf]
    %v185 = vld [vmem:[%s1 + $0x134] sm:$0xf]
    %v186 = vld [vmem:[%s1 + $0x138] sm:$0xf]
    %v187 = vld [vmem:[%s1 + $0x13c] sm:$0xf]
    %v188 = vld [vmem:[%s1 + $0x140] sm:$0xf]
    %v189 = vld [vmem:[%s1 + $0x144] sm:$0xf]
    %v190 = vld [vmem:[%s1 + $0x148] sm:$0xf]
    %v191 = vld [vmem:[%s1 + $0x14c] sm:$0xf]
    %v192 = vld [vmem:[%s1 + $0x150] sm:$0xf]
    %v193 = vld [vmem:[%s1 + $0x154] sm:$0xf]
    %v194 = vld [vmem:[%s1 + $0x158] sm:$0xf]
    %v195 = vld [vmem:[%s1 + $0x15c] sm:$0xf]
    %v196 = vld [vmem:[%s1 + $0x160] sm:$0xf]
    %v197 = vld [vmem:[%s1 + $0x164] sm:$0xf]
    %v198 = vld [vmem:[%s1 + $0x168] sm:$0xf]
    %v199 = vld [vmem:[%s1 + $0x16c] sm:$0xf]
    %v200 = vld [vmem:[%s1 + $0x170] sm:$0xf]
    %v201 = vld [vmem:[%s1 + $0x174] sm:$0xf]
    %v202 = vld [vmem:[%s1 + $0x178] sm:$0xf]
    %v203 = vld [vmem:[%s1 + $0x17c] sm:$0xf]
    %v204 = vld [vmem:[%s1 + $0x180] sm:$0xf]
    %v205 = vld [vmem:[%s1 + $0x184] sm:$0xf]
    %v304 = vunpack.c.l.b16 %v108
    %v305 = vunpack.c.l.b16 %v109
    %v306 = vunpack.c.l.b16 %v110
    %v307 = vunpack.c.l.b16 %v111
    %v308 = vunpack.c.l.b16 %v112
    %v309 = vunpack.c.l.b16 %v113
    %v310 = vunpack.c.l.b16 %v114
    %v311 = vunpack.c.l.b16 %v115
    %v312 = vunpack.c.l.b16 %v116
    %v313 = vunpack.c.l.b16 %v117
    %v314 = vunpack.c.l.b16 %v118
    %v315 = vunpack.c.l.b16 %v119
    %v316 = vunpack.c.l.b16 %v120
    %v317 = vunpack.c.l.b16 %v121
    %v318 = vunpack.c.l.b16 %v122
    %v319 = vunpack.c.l.b16 %v123
    %v320 = vunpack.c.l.b16 %v124
    %v321 = vunpack.c.l.b16 %v125
    %v322 = vunpack.c.l.b16 %v126
    %v323 = vunpack.c.l.b16 %v127
    %v324 = vunpack.c.l.b16 %v128
    %v325 = vunpack.c.l.b16 %v129
    %v326 = vunpack.c.l.b16 %v130
    %v327 = vunpack.c.l.b16 %v131
    %v328 = vunpack.c.l.b16 %v132
    %v329 = vunpack.c.l.b16 %v133
    %v330 = vunpack.c.l.b16 %v134
    %v331 = vunpack.c.l.b16 %v135
    %v332 = vunpack.c.l.b16 %v136
    %v333 = vunpack.c.l.b16 %v137
    %v334 = vunpack.c.l.b16 %v138
    %v335 = vunpack.c.l.b16 %v139
    %v336 = vunpack.c.l.b16 %v140
    %v337 = vunpack.c.l.b16 %v141
    %v338 = vunpack.c.l.b16 %v142
    %v339 = vunpack.c.l.b16 %v143
    %v340 = vunpack.c.l.b16 %v144
    %v341 = vunpack.c.l.b16 %v145
    %v342 = vunpack.c.l.b16 %v146
    %v343 = vunpack.c.l.b16 %v147
    %v344 = vunpack.c.l.b16 %v148
    %v345 = vunpack.c.l.b16 %v149
    %v346 = vunpack.c.l.b16 %v150
    %v347 = vunpack.c.l.b16 %v151
    %v348 = vunpack.c.l.b16 %v152
    %v349 = vunpack.c.l.b16 %v153
    %v350 = vunpack.c.l.b16 %v154
    %v351 = vunpack.c.l.b16 %v155
    %v352 = vunpack.c.l.b16 %v156
    %v353 = vunpack.c.l.b16 %v157
    %v354 = vunpack.c.l.b16 %v158
    %v355 = vunpack.c.l.b16 %v159
    %v356 = vunpack.c.l.b16 %v160
    %v357 = vunpack.c.l.b16 %v161
    %v358 = vunpack.c.l.b16 %v162
    %v359 = vunpack.c.l.b16 %v163
    %v360 = vunpack.c.l.b16 %v164
    %v361 = vunpack.c.l.b16 %v165
    %v362 = vunpack.c.l.b16 %v166
    %v363 = vunpack.c.l.b16 %v167
    %v364 = vunpack.c.l.b16 %v168
    %v365 = vunpack.c.l.b16 %v169
    %v366 = vunpack.c.l.b16 %v170
    %v367 = vunpack.c.l.b16 %v171
    %v368 = vunpack.c.l.b16 %v172
    %v369 = vunpack.c.l.b16 %v173
    %v370 = vunpack.c.l.b16 %v174
    %v371 = vunpack.c.l.b16 %v175
    %v372 = vunpack.c.l.b16 %v176
    %v373 = vunpack.c.l.b16 %v177
    %v374 = vunpack.c.l.b16 %v178
    %v375 = vunpack.c.l.b16 %v179
    %v376 = vunpack.c.l.b16 %v180
    %v377 = vunpack.c.l.b16 %v181
    %v378 = vunpack.c.l.b16 %v182
    %v379 = vunpack.c.l.b16 %v183
    %v380 = vunpack.c.l.b16 %v184
    %v381 = vunpack.c.l.b16 %v185
    %v382 = vunpack.c.l.b16 %v186
    %v383 = vunpack.c.l.b16 %v187
    %v384 = vunpack.c.l.b16 %v188
    %v385 = vunpack.c.l.b16 %v189
    %v386 = vunpack.c.l.b16 %v190
    %v387 = vunpack.c.l.b16 %v191
    %v388 = vunpack.c.l.b16 %v192
    %v389 = vunpack.c.l.b16 %v193
    %v390 = vunpack.c.l.b16 %v194
    %v391 = vunpack.c.l.b16 %v195
    %v392 = vunpack.c.l.b16 %v196
    %v393 = vunpack.c.l.b16 %v197
    %v394 = vunpack.c.l.b16 %v198
    %v395 = vunpack.c.l.b16 %v199
    %v396 = vunpack.c.l.b16 %v200
    %v397 = vunpack.c.l.b16 %v201
    %v398 = vunpack.c.l.b16 %v202
    %v399 = vunpack.c.l.b16 %v203
    %v400 = vunpack.c.l.b16 %v204
    %v401 = vunpack.c.l.b16 %v205
    %v402 = vpack.c.b16 %v305, %v304
    %v403 = vpack.c.b16 %v307, %v306
    %v404 = vpack.c.b16 %v309, %v308
    %v405 = vpack.c.b16 %v311, %v310
    %v406 = vpack.c.b16 %v313, %v312
    %v407 = vpack.c.b16 %v315, %v314
    %v408 = vpack.c.b16 %v317, %v316
    %v409 = vpack.c.b16 %v319, %v318
    %v410 = vpack.c.b16 %v321, %v320
    %v411 = vpack.c.b16 %v323, %v322
    %v412 = vpack.c.b16 %v325, %v324
    %v413 = vpack.c.b16 %v327, %v326
    %v414 = vpack.c.b16 %v329, %v328
    %v415 = vpack.c.b16 %v331, %v330
    %v416 = vpack.c.b16 %v333, %v332
    %v417 = vpack.c.b16 %v335, %v334
    %v418 = vpack.c.b16 %v337, %v336
    %v419 = vpack.c.b16 %v339, %v338
    %v420 = vpack.c.b16 %v341, %v340
    %v421 = vpack.c.b16 %v343, %v342
    %v422 = vpack.c.b16 %v345, %v344
    %v423 = vpack.c.b16 %v347, %v346
    %v424 = vpack.c.b16 %v349, %v348
    %v425 = vpack.c.b16 %v351, %v350
    %v426 = vpack.c.b16 %v353, %v352
    %v427 = vpack.c.b16 %v355, %v354
    %v428 = vpack.c.b16 %v357, %v356
    %v429 = vpack.c.b16 %v359, %v358
    %v430 = vpack.c.b16 %v361, %v360
    %v431 = vpack.c.b16 %v363, %v362
    %v432 = vpack.c.b16 %v365, %v364
    %v433 = vpack.c.b16 %v367, %v366
    %v434 = vpack.c.b16 %v369, %v368
    %v435 = vpack.c.b16 %v371, %v370
    %v436 = vpack.c.b16 %v373, %v372
    %v437 = vpack.c.b16 %v375, %v374
    %v438 = vpack.c.b16 %v377, %v376
    %v439 = vpack.c.b16 %v379, %v378
    %v440 = vpack.c.b16 %v381, %v380
    %v441 = vpack.c.b16 %v383, %v382
    %v442 = vpack.c.b16 %v385, %v384
    %v443 = vpack.c.b16 %v387, %v386
    %v444 = vpack.c.b16 %v389, %v388
    %v445 = vpack.c.b16 %v391, %v390
    %v446 = vpack.c.b16 %v393, %v392
    %v447 = vpack.c.b16 %v395, %v394
    %v448 = vpack.c.b16 %v397, %v396
    %v449 = vpack.c.b16 %v399, %v398
    %v450 = vpack.c.b16 %v401, %v400
    %vm500 = vcmask 130048
    %v502 = vsel %vm500, %v107, 0
    %504 = vmatprep.subr.bf16.mxu0 0
    %505 = vmatpush1.bf16.msra.mxu0 %v402
    %506 = vmatprep.subr.bf16.mxu0 0
    %507 = vmatpush1.bf16.msra.mxu0 %v403
    %508 = vmatprep.subr.bf16.mxu0 0
    %509 = vmatpush1.bf16.msra.mxu0 %v404
    %510 = vmatprep.subr.bf16.mxu0 0
    %511 = vmatpush1.bf16.msra.mxu0 %v405
    %512 = vmatprep.subr.bf16.mxu0 0
    %513 = vmatpush1.bf16.msra.mxu0 %v406
    %514 = vmatprep.subr.bf16.mxu0 0
    %515 = vmatpush1.bf16.msra.mxu0 %v407
    %516 = vmatprep.subr.bf16.mxu0 0
    %517 = vmatpush1.bf16.msra.mxu0 %v408
    %518 = vmatprep.subr.bf16.mxu0 0
    %519 = vmatpush1.bf16.msra.mxu0 %v409
    %520 = vmatprep.subr.bf16.mxu0 0
    %521 = vmatpush1.bf16.msra.mxu0 %v410
    %522 = vmatprep.subr.bf16.mxu0 0
    %523 = vmatpush1.bf16.msra.mxu0 %v411
    %524 = vmatprep.subr.bf16.mxu0 0
    %525 = vmatpush1.bf16.msra.mxu0 %v412
    %526 = vmatprep.subr.bf16.mxu0 0
    %527 = vmatpush1.bf16.msra.mxu0 %v413
    %528 = vmatprep.subr.bf16.mxu0 0
    %529 = vmatpush1.bf16.msra.mxu0 %v414
    %530 = vmatprep.subr.bf16.mxu0 0
    %531 = vmatpush1.bf16.msra.mxu0 %v415
    %532 = vmatprep.subr.bf16.mxu0 0
    %533 = vmatpush1.bf16.msra.mxu0 %v416
    %534 = vmatprep.subr.bf16.mxu0 0
    %535 = vmatpush1.bf16.msra.mxu0 %v417
    %536 = vmatprep.mubr.bf16.mxu0 %v102
    %537 = vmatmul.mubr.bf16.gmra.mrb[0].mxu0 %v101
    %v538 = vpop.f32.mrb[0].mxu0
    %v539 = vadd.f32 0.0, %v538
    %v540 = vpop.f32.mrb[0].mxu0
    %v541 = vpop.f32.mrb[0].mxu0
    %v542 = vpop.f32.mrb[0].mxu0
    %543 = vdwg.mxu0
    %544 = vmatprep.subr.bf16.mxu0 0
    %545 = vmatpush1.bf16.msra.mxu0 %v418
    %546 = vmatprep.subr.bf16.mxu0 0
    %547 = vmatpush1.bf16.msra.mxu0 %v419
    %548 = vmatprep.subr.bf16.mxu0 0
    %549 = vmatpush1.bf16.msra.mxu0 %v420
    %550 = vmatprep.subr.bf16.mxu0 0
    %551 = vmatpush1.bf16.msra.mxu0 %v421
    %552 = vmatprep.subr.bf16.mxu0 0
    %553 = vmatpush1.bf16.msra.mxu0 %v422
    %554 = vmatprep.subr.bf16.mxu0 0
    %555 = vmatpush1.bf16.msra.mxu0 %v423
    %556 = vmatprep.subr.bf16.mxu0 0
    %557 = vmatpush1.bf16.msra.mxu0 %v424
    %558 = vmatprep.subr.bf16.mxu0 0
    %559 = vmatpush1.bf16.msra.mxu0 %v425
    %560 = vmatprep.subr.bf16.mxu0 0
    %561 = vmatpush1.bf16.msra.mxu0 %v426
    %562 = vmatprep.subr.bf16.mxu0 0
    %563 = vmatpush1.bf16.msra.mxu0 %v427
    %564 = vmatprep.subr.bf16.mxu0 0
    %565 = vmatpush1.bf16.msra.mxu0 %v428
    %566 = vmatprep.subr.bf16.mxu0 0
    %567 = vmatpush1.bf16.msra.mxu0 %v429
    %568 = vmatprep.subr.bf16.mxu0 0
    %569 = vmatpush1.bf16.msra.mxu0 %v430
    %570 = vmatprep.subr.bf16.mxu0 0
    %571 = vmatpush1.bf16.msra.mxu0 %v431
    %572 = vmatprep.subr.bf16.mxu0 0
    %573 = vmatpush1.bf16.msra.mxu0 %v432
    %574 = vmatprep.subr.bf16.mxu0 0
    %575 = vmatpush1.bf16.msra.mxu0 %v433
    %576 = vmatprep.mubr.bf16.mxu0 %v104
    %577 = vmatmul.mubr.bf16.gmra.mrb[0].mxu0 %v103
    %v578 = vpop.f32.mrb[0].mxu0
    %v579 = vadd.f32 %v539, %v578
    %v580 = vpop.f32.mrb[0].mxu0
    %v581 = vpop.f32.mrb[0].mxu0
    %v582 = vpop.f32.mrb[0].mxu0
    %583 = vdwg.mxu0
    %584 = vmatprep.subr.bf16.mxu0 0
    %585 = vmatpush1.bf16.msra.mxu0 %v434
    %586 = vmatprep.subr.bf16.mxu0 0
    %587 = vmatpush1.bf16.msra.mxu0 %v435
    %588 = vmatprep.subr.bf16.mxu0 0
    %589 = vmatpush1.bf16.msra.mxu0 %v436
    %590 = vmatprep.subr.bf16.mxu0 0
    %591 = vmatpush1.bf16.msra.mxu0 %v437
    %592 = vmatprep.subr.bf16.mxu0 0
    %593 = vmatpush1.bf16.msra.mxu0 %v438
    %594 = vmatprep.subr.bf16.mxu0 0
    %595 = vmatpush1.bf16.msra.mxu0 %v439
    %596 = vmatprep.subr.bf16.mxu0 0
    %597 = vmatpush1.bf16.msra.mxu0 %v440
    %598 = vmatprep.subr.bf16.mxu0 0
    %599 = vmatpush1.bf16.msra.mxu0 %v441
    %600 = vmatprep.subr.bf16.mxu0 0
    %601 = vmatpush1.bf16.msra.mxu0 %v442
    %602 = vmatprep.subr.bf16.mxu0 0
    %603 = vmatpush1.bf16.msra.mxu0 %v443
    %604 = vmatprep.subr.bf16.mxu0 0
    %605 = vmatpush1.bf16.msra.mxu0 %v444
    %606 = vmatprep.subr.bf16.mxu0 0
    %607 = vmatpush1.bf16.msra.mxu0 %v445
    %608 = vmatprep.subr.bf16.mxu0 0
    %609 = vmatpush1.bf16.msra.mxu0 %v446
    %610 = vmatprep.subr.bf16.mxu0 0
    %611 = vmatpush1.bf16.msra.mxu0 %v447
    %612 = vmatprep.subr.bf16.mxu0 0
    %613 = vmatpush1.bf16.msra.mxu0 %v448
    %614 = vmatprep.subr.bf16.mxu0 0
    %615 = vmatpush1.bf16.msra.mxu0 %v449
    %616 = vmatprep.mubr.bf16.mxu0 %v106
    %617 = vmatmul.mubr.bf16.gmra.mrb[0].mxu0 %v105
    %v618 = vpop.f32.mrb[0].mxu0
    %v619 = vadd.f32 %v579, %v618
    %v620 = vpop.f32.mrb[0].mxu0
    %v621 = vpop.f32.mrb[0].mxu0
    %v622 = vpop.f32.mrb[0].mxu0
    %623 = vdwg.mxu0
    %624 = vmatprep.subr.bf16.mxu0 0
    %625 = vmatpush1.bf16.msra.mxu0 %v450
    %626 = vmatprep.subr.bf16.mxu0 0
    %627 = vmatpush1.bf16.msra.mxu0 0
    %628 = vmatprep.subr.bf16.mxu0 0
    %629 = vmatpush1.bf16.msra.mxu0 0
    %630 = vmatprep.subr.bf16.mxu0 0
    %631 = vmatpush1.bf16.msra.mxu0 0
    %632 = vmatprep.subr.bf16.mxu0 0
    %633 = vmatpush1.bf16.msra.mxu0 0
    %634 = vmatprep.subr.bf16.mxu0 0
    %635 = vmatpush1.bf16.msra.mxu0 0
    %636 = vmatprep.subr.bf16.mxu0 0
    %637 = vmatpush1.bf16.msra.mxu0 0
    %638 = vmatprep.subr.bf16.mxu0 0
    %639 = vmatpush1.bf16.msra.mxu0 0
    %640 = vmatprep.subr.bf16.mxu0 0
    %641 = vmatpush1.bf16.msra.mxu0 0
    %642 = vmatprep.subr.bf16.mxu0 0
    %643 = vmatpush1.bf16.msra.mxu0 0
    %644 = vmatprep.subr.bf16.mxu0 0
    %645 = vmatpush1.bf16.msra.mxu0 0
    %646 = vmatprep.subr.bf16.mxu0 0
    %647 = vmatpush1.bf16.msra.mxu0 0
    %648 = vmatprep.subr.bf16.mxu0 0
    %649 = vmatpush1.bf16.msra.mxu0 0
    %650 = vmatprep.subr.bf16.mxu0 0
    %651 = vmatpush1.bf16.msra.mxu0 0
    %652 = vmatprep.subr.bf16.mxu0 0
    %653 = vmatpush1.bf16.msra.mxu0 0
    %654 = vmatprep.subr.bf16.mxu0 0
    %655 = vmatpush1.bf16.msra.mxu0 0
    %656 = vmatprep.mubr.bf16.mxu0 0
    %657 = vmatmul.mubr.bf16.gmra.mrb[0].mxu0 %v502
    %v658 = vpop.f32.mrb[0].mxu0
    %v659 = vadd.f32 %v619, %v658
    %v660 = vpop.f32.mrb[0].mxu0
    %v661 = vpop.f32.mrb[0].mxu0
    %v662 = vpop.f32.mrb[0].mxu0
    %663 = vdwg.mxu0
    %v665 = vlaneseq
    %v666 = vshrl.u32 %v665, 7
    %v667 = vsub.s32 0, %v666
    %v668 = vrot.slane %v58, %v667
    %v670 = vadd.f32 %v668, %v659
    %v673 = vcombine.high %v48, %v48
    %v675 = vunpack.c.l.s4 1983009808
    %v676 = vunpack.c.0.s8 %v675
    %v677 = vlaneseq
    %v678 = vshrl.u32 %v677, 7
    %v679 = vsub.s32 %v676, %v678
    %v680 = vrot.slane %v48, %v679
    %v682 = vunpack.c.l.s4 1983009808
    %v683 = vunpack.c.0.s8 %v682
    %v684 = vlaneseq
    %v685 = vshrl.u32 %v684, 7
    %v686 = vsub.s32 %v683, %v685
    %v687 = vrot.slane %v673, %v686
    %v688 = vcombine.high %v680, %v680
    %v689 = vcombine.high %v687, %v687
    %v690 = vcombine.high %v49, %v49
    %v692 = vunpack.c.l.s4 1983009808
    %v693 = vunpack.c.0.s8 %v692
    %v694 = vlaneseq
    %v695 = vshrl.u32 %v694, 7
    %v696 = vsub.s32 %v693, %v695
    %v697 = vrot.slane %v49, %v696
    %v699 = vunpack.c.l.s4 1983009808
    %v700 = vunpack.c.0.s8 %v699
    %v701 = vlaneseq
    %v702 = vshrl.u32 %v701, 7
    %v703 = vsub.s32 %v700, %v702
    %v704 = vrot.slane %v690, %v703
    %v705 = vcombine.high %v697, %v697
    %v713 = vpack.c.bf16 %v680, %v680
    %v714 = vpack.c.bf16 %v688, %v688
    %v715 = vpack.c.bf16 %v687, %v687
    %v716 = vpack.c.bf16 %v689, %v689
    %v717 = vpack.c.bf16 %v697, %v697
    %v718 = vpack.c.bf16 %v705, %v705
    %v719 = vpack.c.bf16 %v704, %v704
    %s720 = scalar_lea.vmem %s1, 392
    %v721 = vld [vmem:[%s720] sm:$0xf]
    %v722 = vld [vmem:[%s720 + $0x4] sm:$0xf]
    %v723 = vld [vmem:[%s720 + $0x8] sm:$0xf]
    %v724 = vld [vmem:[%s720 + $0xc] sm:$0xf]
    %v725 = vld [vmem:[%s720 + $0x10] sm:$0xf]
    %v726 = vld [vmem:[%s720 + $0x14] sm:$0xf]
    %v727 = vld [vmem:[%s720 + $0x18] sm:$0xf]
    %v728 = vld [vmem:[%s720 + $0x1c] sm:$0xf]
    %v729 = vld [vmem:[%s720 + $0x20] sm:$0xf]
    %v730 = vld [vmem:[%s720 + $0x24] sm:$0xf]
    %v731 = vld [vmem:[%s720 + $0x28] sm:$0xf]
    %v732 = vld [vmem:[%s720 + $0x2c] sm:$0xf]
    %v733 = vld [vmem:[%s720 + $0x30] sm:$0xf]
    %v734 = vld [vmem:[%s720 + $0x34] sm:$0xf]
    %v735 = vld [vmem:[%s720 + $0x38] sm:$0xf]
    %v736 = vld [vmem:[%s720 + $0x3c] sm:$0xf]
    %v737 = vld [vmem:[%s720 + $0x40] sm:$0xf]
    %v738 = vld [vmem:[%s720 + $0x44] sm:$0xf]
    %v739 = vld [vmem:[%s720 + $0x48] sm:$0xf]
    %v740 = vld [vmem:[%s720 + $0x4c] sm:$0xf]
    %v741 = vld [vmem:[%s720 + $0x50] sm:$0xf]
    %v742 = vld [vmem:[%s720 + $0x54] sm:$0xf]
    %v743 = vld [vmem:[%s720 + $0x58] sm:$0xf]
    %v744 = vld [vmem:[%s720 + $0x5c] sm:$0xf]
    %v745 = vld [vmem:[%s720 + $0x60] sm:$0xf]
    %v746 = vld [vmem:[%s720 + $0x64] sm:$0xf]
    %v747 = vld [vmem:[%s720 + $0x68] sm:$0xf]
    %v748 = vld [vmem:[%s720 + $0x6c] sm:$0xf]
    %v749 = vld [vmem:[%s720 + $0x70] sm:$0xf]
    %v750 = vld [vmem:[%s720 + $0x74] sm:$0xf]
    %v751 = vld [vmem:[%s720 + $0x78] sm:$0xf]
    %v752 = vld [vmem:[%s720 + $0x7c] sm:$0xf]
    %v753 = vld [vmem:[%s720 + $0x80] sm:$0xf]
    %v754 = vld [vmem:[%s720 + $0x84] sm:$0xf]
    %v755 = vld [vmem:[%s720 + $0x88] sm:$0xf]
    %v756 = vld [vmem:[%s720 + $0x8c] sm:$0xf]
    %v757 = vld [vmem:[%s720 + $0x90] sm:$0xf]
    %v758 = vld [vmem:[%s720 + $0x94] sm:$0xf]
    %v759 = vld [vmem:[%s720 + $0x98] sm:$0xf]
    %v760 = vld [vmem:[%s720 + $0x9c] sm:$0xf]
    %v761 = vld [vmem:[%s720 + $0xa0] sm:$0xf]
    %v762 = vld [vmem:[%s720 + $0xa4] sm:$0xf]
    %v763 = vld [vmem:[%s720 + $0xa8] sm:$0xf]
    %v764 = vld [vmem:[%s720 + $0xac] sm:$0xf]
    %v765 = vld [vmem:[%s720 + $0xb0] sm:$0xf]
    %v766 = vld [vmem:[%s720 + $0xb4] sm:$0xf]
    %v767 = vld [vmem:[%s720 + $0xb8] sm:$0xf]
    %v768 = vld [vmem:[%s720 + $0xbc] sm:$0xf]
    %v769 = vld [vmem:[%s720 + $0xc0] sm:$0xf]
    %v770 = vld [vmem:[%s720 + $0xc4] sm:$0xf]
    %v771 = vld [vmem:[%s720 + $0xc8] sm:$0xf]
    %v772 = vld [vmem:[%s720 + $0xcc] sm:$0xf]
    %v773 = vld [vmem:[%s720 + $0xd0] sm:$0xf]
    %v774 = vld [vmem:[%s720 + $0xd4] sm:$0xf]
    %v775 = vld [vmem:[%s720 + $0xd8] sm:$0xf]
    %v776 = vld [vmem:[%s720 + $0xdc] sm:$0xf]
    %v777 = vld [vmem:[%s720 + $0xe0] sm:$0xf]
    %v778 = vld [vmem:[%s720 + $0xe4] sm:$0xf]
    %v779 = vld [vmem:[%s720 + $0xe8] sm:$0xf]
    %v780 = vld [vmem:[%s720 + $0xec] sm:$0xf]
    %v781 = vld [vmem:[%s720 + $0xf0] sm:$0xf]
    %v782 = vld [vmem:[%s720 + $0xf4] sm:$0xf]
    %v783 = vld [vmem:[%s720 + $0xf8] sm:$0xf]
    %v784 = vld [vmem:[%s720 + $0xfc] sm:$0xf]
    %v785 = vld [vmem:[%s720 + $0x100] sm:$0xf]
    %v786 = vld [vmem:[%s720 + $0x104] sm:$0xf]
    %v787 = vld [vmem:[%s720 + $0x108] sm:$0xf]
    %v788 = vld [vmem:[%s720 + $0x10c] sm:$0xf]
    %v789 = vld [vmem:[%s720 + $0x110] sm:$0xf]
    %v790 = vld [vmem:[%s720 + $0x114] sm:$0xf]
    %v791 = vld [vmem:[%s720 + $0x118] sm:$0xf]
    %v792 = vld [vmem:[%s720 + $0x11c] sm:$0xf]
    %v793 = vld [vmem:[%s720 + $0x120] sm:$0xf]
    %v794 = vld [vmem:[%s720 + $0x124] sm:$0xf]
    %v795 = vld [vmem:[%s720 + $0x128] sm:$0xf]
    %v796 = vld [vmem:[%s720 + $0x12c] sm:$0xf]
    %v797 = vld [vmem:[%s720 + $0x130] sm:$0xf]
    %v798 = vld [vmem:[%s720 + $0x134] sm:$0xf]
    %v799 = vld [vmem:[%s720 + $0x138] sm:$0xf]
    %v800 = vld [vmem:[%s720 + $0x13c] sm:$0xf]
    %v801 = vld [vmem:[%s720 + $0x140] sm:$0xf]
    %v802 = vld [vmem:[%s720 + $0x144] sm:$0xf]
    %v803 = vld [vmem:[%s720 + $0x148] sm:$0xf]
    %v804 = vld [vmem:[%s720 + $0x14c] sm:$0xf]
    %v805 = vld [vmem:[%s720 + $0x150] sm:$0xf]
    %v806 = vld [vmem:[%s720 + $0x154] sm:$0xf]
    %v807 = vld [vmem:[%s720 + $0x158] sm:$0xf]
    %v808 = vld [vmem:[%s720 + $0x15c] sm:$0xf]
    %v809 = vld [vmem:[%s720 + $0x160] sm:$0xf]
    %v810 = vld [vmem:[%s720 + $0x164] sm:$0xf]
    %v811 = vld [vmem:[%s720 + $0x168] sm:$0xf]
    %v812 = vld [vmem:[%s720 + $0x16c] sm:$0xf]
    %v813 = vld [vmem:[%s720 + $0x170] sm:$0xf]
    %v814 = vld [vmem:[%s720 + $0x174] sm:$0xf]
    %v815 = vld [vmem:[%s720 + $0x178] sm:$0xf]
    %v816 = vld [vmem:[%s720 + $0x17c] sm:$0xf]
    %v817 = vld [vmem:[%s720 + $0x180] sm:$0xf]
    %v818 = vld [vmem:[%s720 + $0x184] sm:$0xf]
    %v917 = vunpack.c.l.b16 %v721
    %v918 = vunpack.c.l.b16 %v722
    %v919 = vunpack.c.l.b16 %v723
    %v920 = vunpack.c.l.b16 %v724
    %v921 = vunpack.c.l.b16 %v725
    %v922 = vunpack.c.l.b16 %v726
    %v923 = vunpack.c.l.b16 %v727
    %v924 = vunpack.c.l.b16 %v728
    %v925 = vunpack.c.l.b16 %v729
    %v926 = vunpack.c.l.b16 %v730
    %v927 = vunpack.c.l.b16 %v731
    %v928 = vunpack.c.l.b16 %v732
    %v929 = vunpack.c.l.b16 %v733
    %v930 = vunpack.c.l.b16 %v734
    %v931 = vunpack.c.l.b16 %v735
    %v932 = vunpack.c.l.b16 %v736
    %v933 = vunpack.c.l.b16 %v737
    %v934 = vunpack.c.l.b16 %v738
    %v935 = vunpack.c.l.b16 %v739
    %v936 = vunpack.c.l.b16 %v740
    %v937 = vunpack.c.l.b16 %v741
    %v938 = vunpack.c.l.b16 %v742
    %v939 = vunpack.c.l.b16 %v743
    %v940 = vunpack.c.l.b16 %v744
    %v941 = vunpack.c.l.b16 %v745
    %v942 = vunpack.c.l.b16 %v746
    %v943 = vunpack.c.l.b16 %v747
    %v944 = vunpack.c.l.b16 %v748
    %v945 = vunpack.c.l.b16 %v749
    %v946 = vunpack.c.l.b16 %v750
    %v947 = vunpack.c.l.b16 %v751
    %v948 = vunpack.c.l.b16 %v752
    %v949 = vunpack.c.l.b16 %v753
    %v950 = vunpack.c.l.b16 %v754
    %v951 = vunpack.c.l.b16 %v755
    %v952 = vunpack.c.l.b16 %v756
    %v953 = vunpack.c.l.b16 %v757
    %v954 = vunpack.c.l.b16 %v758
    %v955 = vunpack.c.l.b16 %v759
    %v956 = vunpack.c.l.b16 %v760
    %v957 = vunpack.c.l.b16 %v761
    %v958 = vunpack.c.l.b16 %v762
    %v959 = vunpack.c.l.b16 %v763
    %v960 = vunpack.c.l.b16 %v764
    %v961 = vunpack.c.l.b16 %v765
    %v962 = vunpack.c.l.b16 %v766
    %v963 = vunpack.c.l.b16 %v767
    %v964 = vunpack.c.l.b16 %v768
    %v965 = vunpack.c.l.b16 %v769
    %v966 = vunpack.c.l.b16 %v770
    %v967 = vunpack.c.l.b16 %v771
    %v968 = vunpack.c.l.b16 %v772
    %v969 = vunpack.c.l.b16 %v773
    %v970 = vunpack.c.l.b16 %v774
    %v971 = vunpack.c.l.b16 %v775
    %v972 = vunpack.c.l.b16 %v776
    %v973 = vunpack.c.l.b16 %v777
    %v974 = vunpack.c.l.b16 %v778
    %v975 = vunpack.c.l.b16 %v779
    %v976 = vunpack.c.l.b16 %v780
    %v977 = vunpack.c.l.b16 %v781
    %v978 = vunpack.c.l.b16 %v782
    %v979 = vunpack.c.l.b16 %v783
    %v980 = vunpack.c.l.b16 %v784
    %v981 = vunpack.c.l.b16 %v785
    %v982 = vunpack.c.l.b16 %v786
    %v983 = vunpack.c.l.b16 %v787
    %v984 = vunpack.c.l.b16 %v788
    %v985 = vunpack.c.l.b16 %v789
    %v986 = vunpack.c.l.b16 %v790
    %v987 = vunpack.c.l.b16 %v791
    %v988 = vunpack.c.l.b16 %v792
    %v989 = vunpack.c.l.b16 %v793
    %v990 = vunpack.c.l.b16 %v794
    %v991 = vunpack.c.l.b16 %v795
    %v992 = vunpack.c.l.b16 %v796
    %v993 = vunpack.c.l.b16 %v797
    %v994 = vunpack.c.l.b16 %v798
    %v995 = vunpack.c.l.b16 %v799
    %v996 = vunpack.c.l.b16 %v800
    %v997 = vunpack.c.l.b16 %v801
    %v998 = vunpack.c.l.b16 %v802
    %v999 = vunpack.c.l.b16 %v803
    %v1000 = vunpack.c.l.b16 %v804
    %v1001 = vunpack.c.l.b16 %v805
    %v1002 = vunpack.c.l.b16 %v806
    %v1003 = vunpack.c.l.b16 %v807
    %v1004 = vunpack.c.l.b16 %v808
    %v1005 = vunpack.c.l.b16 %v809
    %v1006 = vunpack.c.l.b16 %v810
    %v1007 = vunpack.c.l.b16 %v811
    %v1008 = vunpack.c.l.b16 %v812
    %v1009 = vunpack.c.l.b16 %v813
    %v1010 = vunpack.c.l.b16 %v814
    %v1011 = vunpack.c.l.b16 %v815
    %v1012 = vunpack.c.l.b16 %v816
    %v1013 = vunpack.c.l.b16 %v817
    %v1014 = vunpack.c.l.b16 %v818
    %v1015 = vpack.c.b16 %v918, %v917
    %v1016 = vpack.c.b16 %v920, %v919
    %v1017 = vpack.c.b16 %v922, %v921
    %v1018 = vpack.c.b16 %v924, %v923
    %v1019 = vpack.c.b16 %v926, %v925
    %v1020 = vpack.c.b16 %v928, %v927
    %v1021 = vpack.c.b16 %v930, %v929
    %v1022 = vpack.c.b16 %v932, %v931
    %v1023 = vpack.c.b16 %v934, %v933
    %v1024 = vpack.c.b16 %v936, %v935
    %v1025 = vpack.c.b16 %v938, %v937
    %v1026 = vpack.c.b16 %v940, %v939
    %v1027 = vpack.c.b16 %v942, %v941
    %v1028 = vpack.c.b16 %v944, %v943
    %v1029 = vpack.c.b16 %v946, %v945
    %v1030 = vpack.c.b16 %v948, %v947
    %v1031 = vpack.c.b16 %v950, %v949
    %v1032 = vpack.c.b16 %v952, %v951
    %v1033 = vpack.c.b16 %v954, %v953
    %v1034 = vpack.c.b16 %v956, %v955
    %v1035 = vpack.c.b16 %v958, %v957
    %v1036 = vpack.c.b16 %v960, %v959
    %v1037 = vpack.c.b16 %v962, %v961
    %v1038 = vpack.c.b16 %v964, %v963
    %v1039 = vpack.c.b16 %v966, %v965
    %v1040 = vpack.c.b16 %v968, %v967
    %v1041 = vpack.c.b16 %v970, %v969
    %v1042 = vpack.c.b16 %v972, %v971
    %v1043 = vpack.c.b16 %v974, %v973
    %v1044 = vpack.c.b16 %v976, %v975
    %v1045 = vpack.c.b16 %v978, %v977
    %v1046 = vpack.c.b16 %v980, %v979
    %v1047 = vpack.c.b16 %v982, %v981
    %v1048 = vpack.c.b16 %v984, %v983
    %v1049 = vpack.c.b16 %v986, %v985
    %v1050 = vpack.c.b16 %v988, %v987
    %v1051 = vpack.c.b16 %v990, %v989
    %v1052 = vpack.c.b16 %v992, %v991
    %v1053 = vpack.c.b16 %v994, %v993
    %v1054 = vpack.c.b16 %v996, %v995
    %v1055 = vpack.c.b16 %v998, %v997
    %v1056 = vpack.c.b16 %v1000, %v999
    %v1057 = vpack.c.b16 %v1002, %v1001
    %v1058 = vpack.c.b16 %v1004, %v1003
    %v1059 = vpack.c.b16 %v1006, %v1005
    %v1060 = vpack.c.b16 %v1008, %v1007
    %v1061 = vpack.c.b16 %v1010, %v1009
    %v1062 = vpack.c.b16 %v1012, %v1011
    %v1063 = vpack.c.b16 %v1014, %v1013
    %v1114 = vsel %vm500, %v719, 0
    %1116 = vmatprep.subr.bf16.mxu0 0
    %1117 = vmatpush1.bf16.msra.mxu0 %v1015
    %1118 = vmatprep.subr.bf16.mxu0 0
    %1119 = vmatpush1.bf16.msra.mxu0 %v1016
    %1120 = vmatprep.subr.bf16.mxu0 0
    %1121 = vmatpush1.bf16.msra.mxu0 %v1017
    %1122 = vmatprep.subr.bf16.mxu0 0
    %1123 = vmatpush1.bf16.msra.mxu0 %v1018
    %1124 = vmatprep.subr.bf16.mxu0 0
    %1125 = vmatpush1.bf16.msra.mxu0 %v1019
    %1126 = vmatprep.subr.bf16.mxu0 0
    %1127 = vmatpush1.bf16.msra.mxu0 %v1020
    %1128 = vmatprep.subr.bf16.mxu0 0
    %1129 = vmatpush1.bf16.msra.mxu0 %v1021
    %1130 = vmatprep.subr.bf16.mxu0 0
    %1131 = vmatpush1.bf16.msra.mxu0 %v1022
    %1132 = vmatprep.subr.bf16.mxu0 0
    %1133 = vmatpush1.bf16.msra.mxu0 %v1023
    %1134 = vmatprep.subr.bf16.mxu0 0
    %1135 = vmatpush1.bf16.msra.mxu0 %v1024
    %1136 = vmatprep.subr.bf16.mxu0 0
    %1137 = vmatpush1.bf16.msra.mxu0 %v1025
    %1138 = vmatprep.subr.bf16.mxu0 0
    %1139 = vmatpush1.bf16.msra.mxu0 %v1026
    %1140 = vmatprep.subr.bf16.mxu0 0
    %1141 = vmatpush1.bf16.msra.mxu0 %v1027
    %1142 = vmatprep.subr.bf16.mxu0 0
    %1143 = vmatpush1.bf16.msra.mxu0 %v1028
    %1144 = vmatprep.subr.bf16.mxu0 0
    %1145 = vmatpush1.bf16.msra.mxu0 %v1029
    %1146 = vmatprep.subr.bf16.mxu0 0
    %1147 = vmatpush1.bf16.msra.mxu0 %v1030
    %1148 = vmatprep.mubr.bf16.mxu0 %v714
    %1149 = vmatmul.mubr.bf16.gmra.mrb[0].mxu0 %v713
    %v1150 = vpop.f32.mrb[0].mxu0
    %v1151 = vadd.f32 0.0, %v1150
    %v1152 = vpop.f32.mrb[0].mxu0
    %v1153 = vpop.f32.mrb[0].mxu0
    %v1154 = vpop.f32.mrb[0].mxu0
    %1155 = vdwg.mxu0
    %1156 = vmatprep.subr.bf16.mxu0 0
    %1157 = vmatpush1.bf16.msra.mxu0 %v1031
    %1158 = vmatprep.subr.bf16.mxu0 0
    %1159 = vmatpush1.bf16.msra.mxu0 %v1032
    %1160 = vmatprep.subr.bf16.mxu0 0
    %1161 = vmatpush1.bf16.msra.mxu0 %v1033
    %1162 = vmatprep.subr.bf16.mxu0 0
    %1163 = vmatpush1.bf16.msra.mxu0 %v1034
    %1164 = vmatprep.subr.bf16.mxu0 0
    %1165 = vmatpush1.bf16.msra.mxu0 %v1035
    %1166 = vmatprep.subr.bf16.mxu0 0
    %1167 = vmatpush1.bf16.msra.mxu0 %v1036
    %1168 = vmatprep.subr.bf16.mxu0 0
    %1169 = vmatpush1.bf16.msra.mxu0 %v1037
    %1170 = vmatprep.subr.bf16.mxu0 0
    %1171 = vmatpush1.bf16.msra.mxu0 %v1038
    %1172 = vmatprep.subr.bf16.mxu0 0
    %1173 = vmatpush1.bf16.msra.mxu0 %v1039
    %1174 = vmatprep.subr.bf16.mxu0 0
    %1175 = vmatpush1.bf16.msra.mxu0 %v1040
    %1176 = vmatprep.subr.bf16.mxu0 0
    %1177 = vmatpush1.bf16.msra.mxu0 %v1041
    %1178 = vmatprep.subr.bf16.mxu0 0
    %1179 = vmatpush1.bf16.msra.mxu0 %v1042
    %1180 = vmatprep.subr.bf16.mxu0 0
    %1181 = vmatpush1.bf16.msra.mxu0 %v1043
    %1182 = vmatprep.subr.bf16.mxu0 0
    %1183 = vmatpush1.bf16.msra.mxu0 %v1044
    %1184 = vmatprep.subr.bf16.mxu0 0
    %1185 = vmatpush1.bf16.msra.mxu0 %v1045
    %1186 = vmatprep.subr.bf16.mxu0 0
    %1187 = vmatpush1.bf16.msra.mxu0 %v1046
    %1188 = vmatprep.mubr.bf16.mxu0 %v716
    %1189 = vmatmul.mubr.bf16.gmra.mrb[0].mxu0 %v715
    %v1190 = vpop.f32.mrb[0].mxu0
    %v1191 = vadd.f32 %v1151, %v1190
    %v1192 = vpop.f32.mrb[0].mxu0
    %v1193 = vpop.f32.mrb[0].mxu0
    %v1194 = vpop.f32.mrb[0].mxu0
    %1195 = vdwg.mxu0
    %1196 = vmatprep.subr.bf16.mxu0 0
    %1197 = vmatpush1.bf16.msra.mxu0 %v1047
    %1198 = vmatprep.subr.bf16.mxu0 0
    %1199 = vmatpush1.bf16.msra.mxu0 %v1048
    %1200 = vmatprep.subr.bf16.mxu0 0
    %1201 = vmatpush1.bf16.msra.mxu0 %v1049
    %1202 = vmatprep.subr.bf16.mxu0 0
    %1203 = vmatpush1.bf16.msra.mxu0 %v1050
    %1204 = vmatprep.subr.bf16.mxu0 0
    %1205 = vmatpush1.bf16.msra.mxu0 %v1051
    %1206 = vmatprep.subr.bf16.mxu0 0
    %1207 = vmatpush1.bf16.msra.mxu0 %v1052
    %1208 = vmatprep.subr.bf16.mxu0 0
    %1209 = vmatpush1.bf16.msra.mxu0 %v1053
    %1210 = vmatprep.subr.bf16.mxu0 0
    %1211 = vmatpush1.bf16.msra.mxu0 %v1054
    %1212 = vmatprep.subr.bf16.mxu0 0
    %1213 = vmatpush1.bf16.msra.mxu0 %v1055
    %1214 = vmatprep.subr.bf16.mxu0 0
    %1215 = vmatpush1.bf16.msra.mxu0 %v1056
    %1216 = vmatprep.subr.bf16.mxu0 0
    %1217 = vmatpush1.bf16.msra.mxu0 %v1057
    %1218 = vmatprep.subr.bf16.mxu0 0
    %1219 = vmatpush1.bf16.msra.mxu0 %v1058
    %1220 = vmatprep.subr.bf16.mxu0 0
    %1221 = vmatpush1.bf16.msra.mxu0 %v1059
    %1222 = vmatprep.subr.bf16.mxu0 0
    %1223 = vmatpush1.bf16.msra.mxu0 %v1060
    %1224 = vmatprep.subr.bf16.mxu0 0
    %1225 = vmatpush1.bf16.msra.mxu0 %v1061
    %1226 = vmatprep.subr.bf16.mxu0 0
    %1227 = vmatpush1.bf16.msra.mxu0 %v1062
    %1228 = vmatprep.mubr.bf16.mxu0 %v718
    %1229 = vmatmul.mubr.bf16.gmra.mrb[0].mxu0 %v717
    %v1230 = vpop.f32.mrb[0].mxu0
    %v1231 = vadd.f32 %v1191, %v1230
    %v1232 = vpop.f32.mrb[0].mxu0
    %v1233 = vpop.f32.mrb[0].mxu0
    %v1234 = vpop.f32.mrb[0].mxu0
    %1235 = vdwg.mxu0
    %1236 = vmatprep.subr.bf16.mxu0 0
    %1237 = vmatpush1.bf16.msra.mxu0 %v1063
    %1238 = vmatprep.subr.bf16.mxu0 0
    %1239 = vmatpush1.bf16.msra.mxu0 0
    %1240 = vmatprep.subr.bf16.mxu0 0
    %1241 = vmatpush1.bf16.msra.mxu0 0
    %1242 = vmatprep.subr.bf16.mxu0 0
    %1243 = vmatpush1.bf16.msra.mxu0 0
    %1244 = vmatprep.subr.bf16.mxu0 0
    %1245 = vmatpush1.bf16.msra.mxu0 0
    %1246 = vmatprep.subr.bf16.mxu0 0
    %1247 = vmatpush1.bf16.msra.mxu0 0
    %1248 = vmatprep.subr.bf16.mxu0 0
    %1249 = vmatpush1.bf16.msra.mxu0 0
    %1250 = vmatprep.subr.bf16.mxu0 0
    %1251 = vmatpush1.bf16.msra.mxu0 0
    %1252 = vmatprep.subr.bf16.mxu0 0
    %1253 = vmatpush1.bf16.msra.mxu0 0
    %1254 = vmatprep.subr.bf16.mxu0 0
    %1255 = vmatpush1.bf16.msra.mxu0 0
    %1256 = vmatprep.subr.bf16.mxu0 0
    %1257 = vmatpush1.bf16.msra.mxu0 0
    %1258 = vmatprep.subr.bf16.mxu0 0
    %1259 = vmatpush1.bf16.msra.mxu0 0
    %1260 = vmatprep.subr.bf16.mxu0 0
    %1261 = vmatpush1.bf16.msra.mxu0 0
    %1262 = vmatprep.subr.bf16.mxu0 0
    %1263 = vmatpush1.bf16.msra.mxu0 0
    %1264 = vmatprep.subr.bf16.mxu0 0
    %1265 = vmatpush1.bf16.msra.mxu0 0
    %1266 = vmatprep.subr.bf16.mxu0 0
    %1267 = vmatpush1.bf16.msra.mxu0 0
    %1268 = vmatprep.mubr.bf16.mxu0 0
    %1269 = vmatmul.mubr.bf16.gmra.mrb[0].mxu0 %v1114
    %v1270 = vpop.f32.mrb[0].mxu0
    %v1271 = vadd.f32 %v1231, %v1270
    %v1272 = vpop.f32.mrb[0].mxu0
    %v1273 = vpop.f32.mrb[0].mxu0
    %v1274 = vpop.f32.mrb[0].mxu0
    %1275 = vdwg.mxu0
    %v1276 = vadd.f32 %v670, %v1271
    %v1279 = vcombine.high %v52, %v52
    %v1281 = vunpack.c.l.s4 1983009808
    %v1282 = vunpack.c.0.s8 %v1281
    %v1283 = vlaneseq
    %v1284 = vshrl.u32 %v1283, 7
    %v1285 = vsub.s32 %v1282, %v1284
    %v1286 = vrot.slane %v52, %v1285
    %v1288 = vunpack.c.l.s4 1983009808
    %v1289 = vunpack.c.0.s8 %v1288
    %v1290 = vlaneseq
    %v1291 = vshrl.u32 %v1290, 7
    %v1292 = vsub.s32 %v1289, %v1291
    %v1293 = vrot.slane %v1279, %v1292
    %v1294 = vcombine.high %v1286, %v1286
    %v1295 = vcombine.high %v1293, %v1293
    %v1296 = vcombine.high %v53, %v53
    %v1298 = vunpack.c.l.s4 1983009808
    %v1299 = vunpack.c.0.s8 %v1298
    %v1300 = vlaneseq
    %v1301 = vshrl.u32 %v1300, 7
    %v1302 = vsub.s32 %v1299, %v1301
    %v1303 = vrot.slane %v53, %v1302
    %v1305 = vunpack.c.l.s4 1983009808
    %v1306 = vunpack.c.0.s8 %v1305
    %v1307 = vlaneseq
    %v1308 = vshrl.u32 %v1307, 7
    %v1309 = vsub.s32 %v1306, %v1308
    %v1310 = vrot.slane %v1296, %v1309
    %v1311 = vcombine.high %v1303, %v1303
    %v1319 = vpack.c.bf16 %v1286, %v1286
    %v1320 = vpack.c.bf16 %v1294, %v1294
    %v1321 = vpack.c.bf16 %v1293, %v1293
    %v1322 = vpack.c.bf16 %v1295, %v1295
    %v1323 = vpack.c.bf16 %v1303, %v1303
    %v1324 = vpack.c.bf16 %v1311, %v1311
    %v1325 = vpack.c.bf16 %v1310, %v1310
    %s1326 = scalar_lea.vmem %s1, 784
    %v1327 = vld [vmem:[%s1326] sm:$0xf]
    %v1328 = vld [vmem:[%s1326 + $0x4] sm:$0xf]
    %v1329 = vld [vmem:[%s1326 + $0x8] sm:$0xf]
    %v1330 = vld [vmem:[%s1326 + $0xc] sm:$0xf]
    %v1331 = vld [vmem:[%s1326 + $0x10] sm:$0xf]
    %v1332 = vld [vmem:[%s1326 + $0x14] sm:$0xf]
    %v1333 = vld [vmem:[%s1326 + $0x18] sm:$0xf]
    %v1334 = vld [vmem:[%s1326 + $0x1c] sm:$0xf]
    %v1335 = vld [vmem:[%s1326 + $0x20] sm:$0xf]
    %v1336 = vld [vmem:[%s1326 + $0x24] sm:$0xf]
    %v1337 = vld [vmem:[%s1326 + $0x28] sm:$0xf]
    %v1338 = vld [vmem:[%s1326 + $0x2c] sm:$0xf]
    %v1339 = vld [vmem:[%s1326 + $0x30] sm:$0xf]
    %v1340 = vld [vmem:[%s1326 + $0x34] sm:$0xf]
    %v1341 = vld [vmem:[%s1326 + $0x38] sm:$0xf]
    %v1342 = vld [vmem:[%s1326 + $0x3c] sm:$0xf]
    %v1343 = vld [vmem:[%s1326 + $0x40] sm:$0xf]
    %v1344 = vld [vmem:[%s1326 + $0x44] sm:$0xf]
    %v1345 = vld [vmem:[%s1326 + $0x48] sm:$0xf]
    %v1346 = vld [vmem:[%s1326 + $0x4c] sm:$0xf]
    %v1347 = vld [vmem:[%s1326 + $0x50] sm:$0xf]
    %v1348 = vld [vmem:[%s1326 + $0x54] sm:$0xf]
    %v1349 = vld [vmem:[%s1326 + $0x58] sm:$0xf]
    %v1350 = vld [vmem:[%s1326 + $0x5c] sm:$0xf]
    %v1351 = vld [vmem:[%s1326 + $0x60] sm:$0xf]
    %v1352 = vld [vmem:[%s1326 + $0x64] sm:$0xf]
    %v1353 = vld [vmem:[%s1326 + $0x68] sm:$0xf]
    %v1354 = vld [vmem:[%s1326 + $0x6c] sm:$0xf]
    %v1355 = vld [vmem:[%s1326 + $0x70] sm:$0xf]
    %v1356 = vld [vmem:[%s1326 + $0x74] sm:$0xf]
    %v1357 = vld [vmem:[%s1326 + $0x78] sm:$0xf]
    %v1358 = vld [vmem:[%s1326 + $0x7c] sm:$0xf]
    %v1359 = vld [vmem:[%s1326 + $0x80] sm:$0xf]
    %v1360 = vld [vmem:[%s1326 + $0x84] sm:$0xf]
    %v1361 = vld [vmem:[%s1326 + $0x88] sm:$0xf]
    %v1362 = vld [vmem:[%s1326 + $0x8c] sm:$0xf]
    %v1363 = vld [vmem:[%s1326 + $0x90] sm:$0xf]
    %v1364 = vld [vmem:[%s1326 + $0x94] sm:$0xf]
    %v1365 = vld [vmem:[%s1326 + $0x98] sm:$0xf]
    %v1366 = vld [vmem:[%s1326 + $0x9c] sm:$0xf]
    %v1367 = vld [vmem:[%s1326 + $0xa0] sm:$0xf]
    %v1368 = vld [vmem:[%s1326 + $0xa4] sm:$0xf]
    %v1369 = vld [vmem:[%s1326 + $0xa8] sm:$0xf]
    %v1370 = vld [vmem:[%s1326 + $0xac] sm:$0xf]
    %v1371 = vld [vmem:[%s1326 + $0xb0] sm:$0xf]
    %v1372 = vld [vmem:[%s1326 + $0xb4] sm:$0xf]
    %v1373 = vld [vmem:[%s1326 + $0xb8] sm:$0xf]
    %v1374 = vld [vmem:[%s1326 + $0xbc] sm:$0xf]
    %v1375 = vld [vmem:[%s1326 + $0xc0] sm:$0xf]
    %v1376 = vld [vmem:[%s1326 + $0xc4] sm:$0xf]
    %v1377 = vld [vmem:[%s1326 + $0xc8] sm:$0xf]
    %v1378 = vld [vmem:[%s1326 + $0xcc] sm:$0xf]
    %v1379 = vld [vmem:[%s1326 + $0xd0] sm:$0xf]
    %v1380 = vld [vmem:[%s1326 + $0xd4] sm:$0xf]
    %v1381 = vld [vmem:[%s1326 + $0xd8] sm:$0xf]
    %v1382 = vld [vmem:[%s1326 + $0xdc] sm:$0xf]
    %v1383 = vld [vmem:[%s1326 + $0xe0] sm:$0xf]
    %v1384 = vld [vmem:[%s1326 + $0xe4] sm:$0xf]
    %v1385 = vld [vmem:[%s1326 + $0xe8] sm:$0xf]
    %v1386 = vld [vmem:[%s1326 + $0xec] sm:$0xf]
    %v1387 = vld [vmem:[%s1326 + $0xf0] sm:$0xf]
    %v1388 = vld [vmem:[%s1326 + $0xf4] sm:$0xf]
    %v1389 = vld [vmem:[%s1326 + $0xf8] sm:$0xf]
    %v1390 = vld [vmem:[%s1326 + $0xfc] sm:$0xf]
    %v1391 = vld [vmem:[%s1326 + $0x100] sm:$0xf]
    %v1392 = vld [vmem:[%s1326 + $0x104] sm:$0xf]
    %v1393 = vld [vmem:[%s1326 + $0x108] sm:$0xf]
    %v1394 = vld [vmem:[%s1326 + $0x10c] sm:$0xf]
    %v1395 = vld [vmem:[%s1326 + $0x110] sm:$0xf]
    %v1396 = vld [vmem:[%s1326 + $0x114] sm:$0xf]
    %v1397 = vld [vmem:[%s1326 + $0x118] sm:$0xf]
    %v1398 = vld [vmem:[%s1326 + $0x11c] sm:$0xf]
    %v1399 = vld [vmem:[%s1326 + $0x120] sm:$0xf]
    %v1400 = vld [vmem:[%s1326 + $0x124] sm:$0xf]
    %v1401 = vld [vmem:[%s1326 + $0x128] sm:$0xf]
    %v1402 = vld [vmem:[%s1326 + $0x12c] sm:$0xf]
    %v1403 = vld [vmem:[%s1326 + $0x130] sm:$0xf]
    %v1404 = vld [vmem:[%s1326 + $0x134] sm:$0xf]
    %v1405 = vld [vmem:[%s1326 + $0x138] sm:$0xf]
    %v1406 = vld [vmem:[%s1326 + $0x13c] sm:$0xf]
    %v1407 = vld [vmem:[%s1326 + $0x140] sm:$0xf]
    %v1408 = vld [vmem:[%s1326 + $0x144] sm:$0xf]
    %v1409 = vld [vmem:[%s1326 + $0x148] sm:$0xf]
    %v1410 = vld [vmem:[%s1326 + $0x14c] sm:$0xf]
    %v1411 = vld [vmem:[%s1326 + $0x150] sm:$0xf]
    %v1412 = vld [vmem:[%s1326 + $0x154] sm:$0xf]
    %v1413 = vld [vmem:[%s1326 + $0x158] sm:$0xf]
    %v1414 = vld [vmem:[%s1326 + $0x15c] sm:$0xf]
    %v1415 = vld [vmem:[%s1326 + $0x160] sm:$0xf]
    %v1416 = vld [vmem:[%s1326 + $0x164] sm:$0xf]
    %v1417 = vld [vmem:[%s1326 + $0x168] sm:$0xf]
    %v1418 = vld [vmem:[%s1326 + $0x16c] sm:$0xf]
    %v1419 = vld [vmem:[%s1326 + $0x170] sm:$0xf]
    %v1420 = vld [vmem:[%s1326 + $0x174] sm:$0xf]
    %v1421 = vld [vmem:[%s1326 + $0x178] sm:$0xf]
    %v1422 = vld [vmem:[%s1326 + $0x17c] sm:$0xf]
    %v1423 = vld [vmem:[%s1326 + $0x180] sm:$0xf]
    %v1424 = vld [vmem:[%s1326 + $0x184] sm:$0xf]
    %v1523 = vunpack.c.l.b16 %v1327
    %v1524 = vunpack.c.l.b16 %v1328
    %v1525 = vunpack.c.l.b16 %v1329
    %v1526 = vunpack.c.l.b16 %v1330
    %v1527 = vunpack.c.l.b16 %v1331
    %v1528 = vunpack.c.l.b16 %v1332
    %v1529 = vunpack.c.l.b16 %v1333
    %v1530 = vunpack.c.l.b16 %v1334
    %v1531 = vunpack.c.l.b16 %v1335
    %v1532 = vunpack.c.l.b16 %v1336
    %v1533 = vunpack.c.l.b16 %v1337
    %v1534 = vunpack.c.l.b16 %v1338
    %v1535 = vunpack.c.l.b16 %v1339
    %v1536 = vunpack.c.l.b16 %v1340
    %v1537 = vunpack.c.l.b16 %v1341
    %v1538 = vunpack.c.l.b16 %v1342
    %v1539 = vunpack.c.l.b16 %v1343
    %v1540 = vunpack.c.l.b16 %v1344
    %v1541 = vunpack.c.l.b16 %v1345
    %v1542 = vunpack.c.l.b16 %v1346
    %v1543 = vunpack.c.l.b16 %v1347
    %v1544 = vunpack.c.l.b16 %v1348
    %v1545 = vunpack.c.l.b16 %v1349
    %v1546 = vunpack.c.l.b16 %v1350
    %v1547 = vunpack.c.l.b16 %v1351
    %v1548 = vunpack.c.l.b16 %v1352
    %v1549 = vunpack.c.l.b16 %v1353
    %v1550 = vunpack.c.l.b16 %v1354
    %v1551 = vunpack.c.l.b16 %v1355
    %v1552 = vunpack.c.l.b16 %v1356
    %v1553 = vunpack.c.l.b16 %v1357
    %v1554 = vunpack.c.l.b16 %v1358
    %v1555 = vunpack.c.l.b16 %v1359
    %v1556 = vunpack.c.l.b16 %v1360
    %v1557 = vunpack.c.l.b16 %v1361
    %v1558 = vunpack.c.l.b16 %v1362
    %v1559 = vunpack.c.l.b16 %v1363
    %v1560 = vunpack.c.l.b16 %v1364
    %v1561 = vunpack.c.l.b16 %v1365
    %v1562 = vunpack.c.l.b16 %v1366
    %v1563 = vunpack.c.l.b16 %v1367
    %v1564 = vunpack.c.l.b16 %v1368
    %v1565 = vunpack.c.l.b16 %v1369
    %v1566 = vunpack.c.l.b16 %v1370
    %v1567 = vunpack.c.l.b16 %v1371
    %v1568 = vunpack.c.l.b16 %v1372
    %v1569 = vunpack.c.l.b16 %v1373
    %v1570 = vunpack.c.l.b16 %v1374
    %v1571 = vunpack.c.l.b16 %v1375
    %v1572 = vunpack.c.l.b16 %v1376
    %v1573 = vunpack.c.l.b16 %v1377
    %v1574 = vunpack.c.l.b16 %v1378
    %v1575 = vunpack.c.l.b16 %v1379
    %v1576 = vunpack.c.l.b16 %v1380
    %v1577 = vunpack.c.l.b16 %v1381
    %v1578 = vunpack.c.l.b16 %v1382
    %v1579 = vunpack.c.l.b16 %v1383
    %v1580 = vunpack.c.l.b16 %v1384
    %v1581 = vunpack.c.l.b16 %v1385
    %v1582 = vunpack.c.l.b16 %v1386
    %v1583 = vunpack.c.l.b16 %v1387
    %v1584 = vunpack.c.l.b16 %v1388
    %v1585 = vunpack.c.l.b16 %v1389
    %v1586 = vunpack.c.l.b16 %v1390
    %v1587 = vunpack.c.l.b16 %v1391
    %v1588 = vunpack.c.l.b16 %v1392
    %v1589 = vunpack.c.l.b16 %v1393
    %v1590 = vunpack.c.l.b16 %v1394
    %v1591 = vunpack.c.l.b16 %v1395
    %v1592 = vunpack.c.l.b16 %v1396
    %v1593 = vunpack.c.l.b16 %v1397
    %v1594 = vunpack.c.l.b16 %v1398
    %v1595 = vunpack.c.l.b16 %v1399
    %v1596 = vunpack.c.l.b16 %v1400
    %v1597 = vunpack.c.l.b16 %v1401
    %v1598 = vunpack.c.l.b16 %v1402
    %v1599 = vunpack.c.l.b16 %v1403
    %v1600 = vunpack.c.l.b16 %v1404
    %v1601 = vunpack.c.l.b16 %v1405
    %v1602 = vunpack.c.l.b16 %v1406
    %v1603 = vunpack.c.l.b16 %v1407
    %v1604 = vunpack.c.l.b16 %v1408
    %v1605 = vunpack.c.l.b16 %v1409
    %v1606 = vunpack.c.l.b16 %v1410
    %v1607 = vunpack.c.l.b16 %v1411
    %v1608 = vunpack.c.l.b16 %v1412
    %v1609 = vunpack.c.l.b16 %v1413
    %v1610 = vunpack.c.l.b16 %v1414
    %v1611 = vunpack.c.l.b16 %v1415
    %v1612 = vunpack.c.l.b16 %v1416
    %v1613 = vunpack.c.l.b16 %v1417
    %v1614 = vunpack.c.l.b16 %v1418
    %v1615 = vunpack.c.l.b16 %v1419
    %v1616 = vunpack.c.l.b16 %v1420
    %v1617 = vunpack.c.l.b16 %v1421
    %v1618 = vunpack.c.l.b16 %v1422
    %v1619 = vunpack.c.l.b16 %v1423
    %v1620 = vunpack.c.l.b16 %v1424
    %v1621 = vpack.c.b16 %v1524, %v1523
    %v1622 = vpack.c.b16 %v1526, %v1525
    %v1623 = vpack.c.b16 %v1528, %v1527
    %v1624 = vpack.c.b16 %v1530, %v1529
    %v1625 = vpack.c.b16 %v1532, %v1531
    %v1626 = vpack.c.b16 %v1534, %v1533
    %v1627 = vpack.c.b16 %v1536, %v1535
    %v1628 = vpack.c.b16 %v1538, %v1537
    %v1629 = vpack.c.b16 %v1540, %v1539
    %v1630 = vpack.c.b16 %v1542, %v1541
    %v1631 = vpack.c.b16 %v1544, %v1543
    %v1632 = vpack.c.b16 %v1546, %v1545
    %v1633 = vpack.c.b16 %v1548, %v1547
    %v1634 = vpack.c.b16 %v1550, %v1549
    %v1635 = vpack.c.b16 %v1552, %v1551
    %v1636 = vpack.c.b16 %v1554, %v1553
    %v1637 = vpack.c.b16 %v1556, %v1555
    %v1638 = vpack.c.b16 %v1558, %v1557
    %v1639 = vpack.c.b16 %v1560, %v1559
    %v1640 = vpack.c.b16 %v1562, %v1561
    %v1641 = vpack.c.b16 %v1564, %v1563
    %v1642 = vpack.c.b16 %v1566, %v1565
    %v1643 = vpack.c.b16 %v1568, %v1567
    %v1644 = vpack.c.b16 %v1570, %v1569
    %v1645 = vpack.c.b16 %v1572, %v1571
    %v1646 = vpack.c.b16 %v1574, %v1573
    %v1647 = vpack.c.b16 %v1576, %v1575
    %v1648 = vpack.c.b16 %v1578, %v1577
    %v1649 = vpack.c.b16 %v1580, %v1579
    %v1650 = vpack.c.b16 %v1582, %v1581
    %v1651 = vpack.c.b16 %v1584, %v1583
    %v1652 = vpack.c.b16 %v1586, %v1585
    %v1653 = vpack.c.b16 %v1588, %v1587
    %v1654 = vpack.c.b16 %v1590, %v1589
    %v1655 = vpack.c.b16 %v1592, %v1591
    %v1656 = vpack.c.b16 %v1594, %v1593
    %v1657 = vpack.c.b16 %v1596, %v1595
    %v1658 = vpack.c.b16 %v1598, %v1597
    %v1659 = vpack.c.b16 %v1600, %v1599
    %v1660 = vpack.c.b16 %v1602, %v1601
    %v1661 = vpack.c.b16 %v1604, %v1603
    %v1662 = vpack.c.b16 %v1606, %v1605
    %v1663 = vpack.c.b16 %v1608, %v1607
    %v1664 = vpack.c.b16 %v1610, %v1609
    %v1665 = vpack.c.b16 %v1612, %v1611
    %v1666 = vpack.c.b16 %v1614, %v1613
    %v1667 = vpack.c.b16 %v1616, %v1615
    %v1668 = vpack.c.b16 %v1618, %v1617
    %v1669 = vpack.c.b16 %v1620, %v1619
    %v1720 = vsel %vm500, %v1325, 0
    %1722 = vmatprep.subr.bf16.mxu0 0
    %1723 = vmatpush1.bf16.msra.mxu0 %v1621
    %1724 = vmatprep.subr.bf16.mxu0 0
    %1725 = vmatpush1.bf16.msra.mxu0 %v1622
    %1726 = vmatprep.subr.bf16.mxu0 0
    %1727 = vmatpush1.bf16.msra.mxu0 %v1623
    %1728 = vmatprep.subr.bf16.mxu0 0
    %1729 = vmatpush1.bf16.msra.mxu0 %v1624
    %1730 = vmatprep.subr.bf16.mxu0 0
    %1731 = vmatpush1.bf16.msra.mxu0 %v1625
    %1732 = vmatprep.subr.bf16.mxu0 0
    %1733 = vmatpush1.bf16.msra.mxu0 %v1626
    %1734 = vmatprep.subr.bf16.mxu0 0
    %1735 = vmatpush1.bf16.msra.mxu0 %v1627
    %1736 = vmatprep.subr.bf16.mxu0 0
    %1737 = vmatpush1.bf16.msra.mxu0 %v1628
    %1738 = vmatprep.subr.bf16.mxu0 0
    %1739 = vmatpush1.bf16.msra.mxu0 %v1629
    %1740 = vmatprep.subr.bf16.mxu0 0
    %1741 = vmatpush1.bf16.msra.mxu0 %v1630
    %1742 = vmatprep.subr.bf16.mxu0 0
    %1743 = vmatpush1.bf16.msra.mxu0 %v1631
    %1744 = vmatprep.subr.bf16.mxu0 0
    %1745 = vmatpush1.bf16.msra.mxu0 %v1632
    %1746 = vmatprep.subr.bf16.mxu0 0
    %1747 = vmatpush1.bf16.msra.mxu0 %v1633
    %1748 = vmatprep.subr.bf16.mxu0 0
    %1749 = vmatpush1.bf16.msra.mxu0 %v1634
    %1750 = vmatprep.subr.bf16.mxu0 0
    %1751 = vmatpush1.bf16.msra.mxu0 %v1635
    %1752 = vmatprep.subr.bf16.mxu0 0
    %1753 = vmatpush1.bf16.msra.mxu0 %v1636
    %1754 = vmatprep.mubr.bf16.mxu0 %v1320
    %1755 = vmatmul.mubr.bf16.gmra.mrb[0].mxu0 %v1319
    %v1756 = vpop.f32.mrb[0].mxu0
    %v1757 = vadd.f32 0.0, %v1756
    %v1758 = vpop.f32.mrb[0].mxu0
    %v1759 = vpop.f32.mrb[0].mxu0
    %v1760 = vpop.f32.mrb[0].mxu0
    %1761 = vdwg.mxu0
    %1762 = vmatprep.subr.bf16.mxu0 0
    %1763 = vmatpush1.bf16.msra.mxu0 %v1637
    %1764 = vmatprep.subr.bf16.mxu0 0
    %1765 = vmatpush1.bf16.msra.mxu0 %v1638
    %1766 = vmatprep.subr.bf16.mxu0 0
    %1767 = vmatpush1.bf16.msra.mxu0 %v1639
    %1768 = vmatprep.subr.bf16.mxu0 0
    %1769 = vmatpush1.bf16.msra.mxu0 %v1640
    %1770 = vmatprep.subr.bf16.mxu0 0
    %1771 = vmatpush1.bf16.msra.mxu0 %v1641
    %1772 = vmatprep.subr.bf16.mxu0 0
    %1773 = vmatpush1.bf16.msra.mxu0 %v1642
    %1774 = vmatprep.subr.bf16.mxu0 0
    %1775 = vmatpush1.bf16.msra.mxu0 %v1643
    %1776 = vmatprep.subr.bf16.mxu0 0
    %1777 = vmatpush1.bf16.msra.mxu0 %v1644
    %1778 = vmatprep.subr.bf16.mxu0 0
    %1779 = vmatpush1.bf16.msra.mxu0 %v1645
    %1780 = vmatprep.subr.bf16.mxu0 0
    %1781 = vmatpush1.bf16.msra.mxu0 %v1646
    %1782 = vmatprep.subr.bf16.mxu0 0
    %1783 = vmatpush1.bf16.msra.mxu0 %v1647
    %1784 = vmatprep.subr.bf16.mxu0 0
    %1785 = vmatpush1.bf16.msra.mxu0 %v1648
    %1786 = vmatprep.subr.bf16.mxu0 0
    %1787 = vmatpush1.bf16.msra.mxu0 %v1649
    %1788 = vmatprep.subr.bf16.mxu0 0
    %1789 = vmatpush1.bf16.msra.mxu0 %v1650
    %1790 = vmatprep.subr.bf16.mxu0 0
    %1791 = vmatpush1.bf16.msra.mxu0 %v1651
    %1792 = vmatprep.subr.bf16.mxu0 0
    %1793 = vmatpush1.bf16.msra.mxu0 %v1652
    %1794 = vmatprep.mubr.bf16.mxu0 %v1322
    %1795 = vmatmul.mubr.bf16.gmra.mrb[0].mxu0 %v1321
    %v1796 = vpop.f32.mrb[0].mxu0
    %v1797 = vadd.f32 %v1757, %v1796
    %v1798 = vpop.f32.mrb[0].mxu0
    %v1799 = vpop.f32.mrb[0].mxu0
    %v1800 = vpop.f32.mrb[0].mxu0
    %1801 = vdwg.mxu0
    %1802 = vmatprep.subr.bf16.mxu0 0
    %1803 = vmatpush1.bf16.msra.mxu0 %v1653
    %1804 = vmatprep.subr.bf16.mxu0 0
    %1805 = vmatpush1.bf16.msra.mxu0 %v1654
    %1806 = vmatprep.subr.bf16.mxu0 0
    %1807 = vmatpush1.bf16.msra.mxu0 %v1655
    %1808 = vmatprep.subr.bf16.mxu0 0
    %1809 = vmatpush1.bf16.msra.mxu0 %v1656
    %1810 = vmatprep.subr.bf16.mxu0 0
    %1811 = vmatpush1.bf16.msra.mxu0 %v1657
    %1812 = vmatprep.subr.bf16.mxu0 0
    %1813 = vmatpush1.bf16.msra.mxu0 %v1658
    %1814 = vmatprep.subr.bf16.mxu0 0
    %1815 = vmatpush1.bf16.msra.mxu0 %v1659
    %1816 = vmatprep.subr.bf16.mxu0 0
    %1817 = vmatpush1.bf16.msra.mxu0 %v1660
    %1818 = vmatprep.subr.bf16.mxu0 0
    %1819 = vmatpush1.bf16.msra.mxu0 %v1661
    %1820 = vmatprep.subr.bf16.mxu0 0
    %1821 = vmatpush1.bf16.msra.mxu0 %v1662
    %1822 = vmatprep.subr.bf16.mxu0 0
    %1823 = vmatpush1.bf16.msra.mxu0 %v1663
    %1824 = vmatprep.subr.bf16.mxu0 0
    %1825 = vmatpush1.bf16.msra.mxu0 %v1664
    %1826 = vmatprep.subr.bf16.mxu0 0
    %1827 = vmatpush1.bf16.msra.mxu0 %v1665
    %1828 = vmatprep.subr.bf16.mxu0 0
    %1829 = vmatpush1.bf16.msra.mxu0 %v1666
    %1830 = vmatprep.subr.bf16.mxu0 0
    %1831 = vmatpush1.bf16.msra.mxu0 %v1667
    %1832 = vmatprep.subr.bf16.mxu0 0
    %1833 = vmatpush1.bf16.msra.mxu0 %v1668
    %1834 = vmatprep.mubr.bf16.mxu0 %v1324
    %1835 = vmatmul.mubr.bf16.gmra.mrb[0].mxu0 %v1323
    %v1836 = vpop.f32.mrb[0].mxu0
    %v1837 = vadd.f32 %v1797, %v1836
    %v1838 = vpop.f32.mrb[0].mxu0
    %v1839 = vpop.f32.mrb[0].mxu0
    %v1840 = vpop.f32.mrb[0].mxu0
    %1841 = vdwg.mxu0
    %1842 = vmatprep.subr.bf16.mxu0 0
    %1843 = vmatpush1.bf16.msra.mxu0 %v1669
    %1844 = vmatprep.subr.bf16.mxu0 0
    %1845 = vmatpush1.bf16.msra.mxu0 0
    %1846 = vmatprep.subr.bf16.mxu0 0
    %1847 = vmatpush1.bf16.msra.mxu0 0
    %1848 = vmatprep.subr.bf16.mxu0 0
    %1849 = vmatpush1.bf16.msra.mxu0 0
    %1850 = vmatprep.subr.bf16.mxu0 0
    %1851 = vmatpush1.bf16.msra.mxu0 0
    %1852 = vmatprep.subr.bf16.mxu0 0
    %1853 = vmatpush1.bf16.msra.mxu0 0
    %1854 = vmatprep.subr.bf16.mxu0 0
    %1855 = vmatpush1.bf16.msra.mxu0 0
    %1856 = vmatprep.subr.bf16.mxu0 0
    %1857 = vmatpush1.bf16.msra.mxu0 0
    %1858 = vmatprep.subr.bf16.mxu0 0
    %1859 = vmatpush1.bf16.msra.mxu0 0
    %1860 = vmatprep.subr.bf16.mxu0 0
    %1861 = vmatpush1.bf16.msra.mxu0 0
    %1862 = vmatprep.subr.bf16.mxu0 0
    %1863 = vmatpush1.bf16.msra.mxu0 0
    %1864 = vmatprep.subr.bf16.mxu0 0
    %1865 = vmatpush1.bf16.msra.mxu0 0
    %1866 = vmatprep.subr.bf16.mxu0 0
    %1867 = vmatpush1.bf16.msra.mxu0 0
    %1868 = vmatprep.subr.bf16.mxu0 0
    %1869 = vmatpush1.bf16.msra.mxu0 0
    %1870 = vmatprep.subr.bf16.mxu0 0
    %1871 = vmatpush1.bf16.msra.mxu0 0
    %1872 = vmatprep.subr.bf16.mxu0 0
    %1873 = vmatpush1.bf16.msra.mxu0 0
    %1874 = vmatprep.mubr.bf16.mxu0 0
    %1875 = vmatmul.mubr.bf16.gmra.mrb[0].mxu0 %v1720
    %v1876 = vpop.f32.mrb[0].mxu0
    %v1877 = vadd.f32 %v1837, %v1876
    %v1878 = vpop.f32.mrb[0].mxu0
    %v1879 = vpop.f32.mrb[0].mxu0
    %v1880 = vpop.f32.mrb[0].mxu0
    %1881 = vdwg.mxu0
    %v1882 = vadd.f32 %v1276, %v1877
    %v1885 = vcombine.high %v56, %v56
    %v1887 = vunpack.c.l.s4 1983009808
    %v1888 = vunpack.c.0.s8 %v1887
    %v1889 = vlaneseq
    %v1890 = vshrl.u32 %v1889, 7
    %v1891 = vsub.s32 %v1888, %v1890
    %v1892 = vrot.slane %v56, %v1891
    %v1894 = vunpack.c.l.s4 1983009808
    %v1895 = vunpack.c.0.s8 %v1894
    %v1896 = vlaneseq
    %v1897 = vshrl.u32 %v1896, 7
    %v1898 = vsub.s32 %v1895, %v1897
    %v1899 = vrot.slane %v1885, %v1898
    %v1900 = vcombine.high %v1892, %v1892
    %v1901 = vcombine.high %v1899, %v1899
    %v1902 = vcombine.high %v57, %v57
    %v1904 = vunpack.c.l.s4 1983009808
    %v1905 = vunpack.c.0.s8 %v1904
    %v1906 = vlaneseq
    %v1907 = vshrl.u32 %v1906, 7
    %v1908 = vsub.s32 %v1905, %v1907
    %v1909 = vrot.slane %v57, %v1908
    %v1911 = vunpack.c.l.s4 1983009808
    %v1912 = vunpack.c.0.s8 %v1911
    %v1913 = vlaneseq
    %v1914 = vshrl.u32 %v1913, 7
    %v1915 = vsub.s32 %v1912, %v1914
    %v1916 = vrot.slane %v1902, %v1915
    %v1917 = vcombine.high %v1909, %v1909
    %v1925 = vpack.c.bf16 %v1892, %v1892
    %v1926 = vpack.c.bf16 %v1900, %v1900
    %v1927 = vpack.c.bf16 %v1899, %v1899
    %v1928 = vpack.c.bf16 %v1901, %v1901
    %v1929 = vpack.c.bf16 %v1909, %v1909
    %v1930 = vpack.c.bf16 %v1917, %v1917
    %v1931 = vpack.c.bf16 %v1916, %v1916
    %s1932 = scalar_lea.vmem %s1, 1176
    %v1933 = vld [vmem:[%s1932] sm:$0xf]
    %v1934 = vld [vmem:[%s1932 + $0x4] sm:$0xf]
    %v1935 = vld [vmem:[%s1932 + $0x8] sm:$0xf]
    %v1936 = vld [vmem:[%s1932 + $0xc] sm:$0xf]
    %v1937 = vld [vmem:[%s1932 + $0x10] sm:$0xf]
    %v1938 = vld [vmem:[%s1932 + $0x14] sm:$0xf]
    %v1939 = vld [vmem:[%s1932 + $0x18] sm:$0xf]
    %v1940 = vld [vmem:[%s1932 + $0x1c] sm:$0xf]
    %v1941 = vld [vmem:[%s1932 + $0x20] sm:$0xf]
    %v1942 = vld [vmem:[%s1932 + $0x24] sm:$0xf]
    %v1943 = vld [vmem:[%s1932 + $0x28] sm:$0xf]
    %v1944 = vld [vmem:[%s1932 + $0x2c] sm:$0xf]
    %v1945 = vld [vmem:[%s1932 + $0x30] sm:$0xf]
    %v1946 = vld [vmem:[%s1932 + $0x34] sm:$0xf]
    %v1947 = vld [vmem:[%s1932 + $0x38] sm:$0xf]
    %v1948 = vld [vmem:[%s1932 + $0x3c] sm:$0xf]
    %v1949 = vld [vmem:[%s1932 + $0x40] sm:$0xf]
    %v1950 = vld [vmem:[%s1932 + $0x44] sm:$0xf]
    %v1951 = vld [vmem:[%s1932 + $0x48] sm:$0xf]
    %v1952 = vld [vmem:[%s1932 + $0x4c] sm:$0xf]
    %v1953 = vld [vmem:[%s1932 + $0x50] sm:$0xf]
    %v1954 = vld [vmem:[%s1932 + $0x54] sm:$0xf]
    %v1955 = vld [vmem:[%s1932 + $0x58] sm:$0xf]
    %v1956 = vld [vmem:[%s1932 + $0x5c] sm:$0xf]
    %v1957 = vld [vmem:[%s1932 + $0x60] sm:$0xf]
    %v1958 = vld [vmem:[%s1932 + $0x64] sm:$0xf]
    %v1959 = vld [vmem:[%s1932 + $0x68] sm:$0xf]
    %v1960 = vld [vmem:[%s1932 + $0x6c] sm:$0xf]
    %v1961 = vld [vmem:[%s1932 + $0x70] sm:$0xf]
    %v1962 = vld [vmem:[%s1932 + $0x74] sm:$0xf]
    %v1963 = vld [vmem:[%s1932 + $0x78] sm:$0xf]
    %v1964 = vld [vmem:[%s1932 + $0x7c] sm:$0xf]
    %v1965 = vld [vmem:[%s1932 + $0x80] sm:$0xf]
    %v1966 = vld [vmem:[%s1932 + $0x84] sm:$0xf]
    %v1967 = vld [vmem:[%s1932 + $0x88] sm:$0xf]
    %v1968 = vld [vmem:[%s1932 + $0x8c] sm:$0xf]
    %v1969 = vld [vmem:[%s1932 + $0x90] sm:$0xf]
    %v1970 = vld [vmem:[%s1932 + $0x94] sm:$0xf]
    %v1971 = vld [vmem:[%s1932 + $0x98] sm:$0xf]
    %v1972 = vld [vmem:[%s1932 + $0x9c] sm:$0xf]
    %v1973 = vld [vmem:[%s1932 + $0xa0] sm:$0xf]
    %v1974 = vld [vmem:[%s1932 + $0xa4] sm:$0xf]
    %v1975 = vld [vmem:[%s1932 + $0xa8] sm:$0xf]
    %v1976 = vld [vmem:[%s1932 + $0xac] sm:$0xf]
    %v1977 = vld [vmem:[%s1932 + $0xb0] sm:$0xf]
    %v1978 = vld [vmem:[%s1932 + $0xb4] sm:$0xf]
    %v1979 = vld [vmem:[%s1932 + $0xb8] sm:$0xf]
    %v1980 = vld [vmem:[%s1932 + $0xbc] sm:$0xf]
    %v1981 = vld [vmem:[%s1932 + $0xc0] sm:$0xf]
    %v1982 = vld [vmem:[%s1932 + $0xc4] sm:$0xf]
    %v1983 = vld [vmem:[%s1932 + $0xc8] sm:$0xf]
    %v1984 = vld [vmem:[%s1932 + $0xcc] sm:$0xf]
    %v1985 = vld [vmem:[%s1932 + $0xd0] sm:$0xf]
    %v1986 = vld [vmem:[%s1932 + $0xd4] sm:$0xf]
    %v1987 = vld [vmem:[%s1932 + $0xd8] sm:$0xf]
    %v1988 = vld [vmem:[%s1932 + $0xdc] sm:$0xf]
    %v1989 = vld [vmem:[%s1932 + $0xe0] sm:$0xf]
    %v1990 = vld [vmem:[%s1932 + $0xe4] sm:$0xf]
    %v1991 = vld [vmem:[%s1932 + $0xe8] sm:$0xf]
    %v1992 = vld [vmem:[%s1932 + $0xec] sm:$0xf]
    %v1993 = vld [vmem:[%s1932 + $0xf0] sm:$0xf]
    %v1994 = vld [vmem:[%s1932 + $0xf4] sm:$0xf]
    %v1995 = vld [vmem:[%s1932 + $0xf8] sm:$0xf]
    %v1996 = vld [vmem:[%s1932 + $0xfc] sm:$0xf]
    %v1997 = vld [vmem:[%s1932 + $0x100] sm:$0xf]
    %v1998 = vld [vmem:[%s1932 + $0x104] sm:$0xf]
    %v1999 = vld [vmem:[%s1932 + $0x108] sm:$0xf]
    %v2000 = vld [vmem:[%s1932 + $0x10c] sm:$0xf]
    %v2001 = vld [vmem:[%s1932 + $0x110] sm:$0xf]
    %v2002 = vld [vmem:[%s1932 + $0x114] sm:$0xf]
    %v2003 = vld [vmem:[%s1932 + $0x118] sm:$0xf]
    %v2004 = vld [vmem:[%s1932 + $0x11c] sm:$0xf]
    %v2005 = vld [vmem:[%s1932 + $0x120] sm:$0xf]
    %v2006 = vld [vmem:[%s1932 + $0x124] sm:$0xf]
    %v2007 = vld [vmem:[%s1932 + $0x128] sm:$0xf]
    %v2008 = vld [vmem:[%s1932 + $0x12c] sm:$0xf]
    %v2009 = vld [vmem:[%s1932 + $0x130] sm:$0xf]
    %v2010 = vld [vmem:[%s1932 + $0x134] sm:$0xf]
    %v2011 = vld [vmem:[%s1932 + $0x138] sm:$0xf]
    %v2012 = vld [vmem:[%s1932 + $0x13c] sm:$0xf]
    %v2013 = vld [vmem:[%s1932 + $0x140] sm:$0xf]
    %v2014 = vld [vmem:[%s1932 + $0x144] sm:$0xf]
    %v2015 = vld [vmem:[%s1932 + $0x148] sm:$0xf]
    %v2016 = vld [vmem:[%s1932 + $0x14c] sm:$0xf]
    %v2017 = vld [vmem:[%s1932 + $0x150] sm:$0xf]
    %v2018 = vld [vmem:[%s1932 + $0x154] sm:$0xf]
    %v2019 = vld [vmem:[%s1932 + $0x158] sm:$0xf]
    %v2020 = vld [vmem:[%s1932 + $0x15c] sm:$0xf]
    %v2021 = vld [vmem:[%s1932 + $0x160] sm:$0xf]
    %v2022 = vld [vmem:[%s1932 + $0x164] sm:$0xf]
    %v2023 = vld [vmem:[%s1932 + $0x168] sm:$0xf]
    %v2024 = vld [vmem:[%s1932 + $0x16c] sm:$0xf]
    %v2025 = vld [vmem:[%s1932 + $0x170] sm:$0xf]
    %v2026 = vld [vmem:[%s1932 + $0x174] sm:$0xf]
    %v2027 = vld [vmem:[%s1932 + $0x178] sm:$0xf]
    %v2028 = vld [vmem:[%s1932 + $0x17c] sm:$0xf]
    %v2029 = vld [vmem:[%s1932 + $0x180] sm:$0xf]
    %v2030 = vld [vmem:[%s1932 + $0x184] sm:$0xf]
    %v2129 = vunpack.c.l.b16 %v1933
    %v2130 = vunpack.c.l.b16 %v1934
    %v2131 = vunpack.c.l.b16 %v1935
    %v2132 = vunpack.c.l.b16 %v1936
    %v2133 = vunpack.c.l.b16 %v1937
    %v2134 = vunpack.c.l.b16 %v1938
    %v2135 = vunpack.c.l.b16 %v1939
    %v2136 = vunpack.c.l.b16 %v1940
    %v2137 = vunpack.c.l.b16 %v1941
    %v2138 = vunpack.c.l.b16 %v1942
    %v2139 = vunpack.c.l.b16 %v1943
    %v2140 = vunpack.c.l.b16 %v1944
    %v2141 = vunpack.c.l.b16 %v1945
    %v2142 = vunpack.c.l.b16 %v1946
    %v2143 = vunpack.c.l.b16 %v1947
    %v2144 = vunpack.c.l.b16 %v1948
    %v2145 = vunpack.c.l.b16 %v1949
    %v2146 = vunpack.c.l.b16 %v1950
    %v2147 = vunpack.c.l.b16 %v1951
    %v2148 = vunpack.c.l.b16 %v1952
    %v2149 = vunpack.c.l.b16 %v1953
    %v2150 = vunpack.c.l.b16 %v1954
    %v2151 = vunpack.c.l.b16 %v1955
    %v2152 = vunpack.c.l.b16 %v1956
    %v2153 = vunpack.c.l.b16 %v1957
    %v2154 = vunpack.c.l.b16 %v1958
    %v2155 = vunpack.c.l.b16 %v1959
    %v2156 = vunpack.c.l.b16 %v1960
    %v2157 = vunpack.c.l.b16 %v1961
    %v2158 = vunpack.c.l.b16 %v1962
    %v2159 = vunpack.c.l.b16 %v1963
    %v2160 = vunpack.c.l.b16 %v1964
    %v2161 = vunpack.c.l.b16 %v1965
    %v2162 = vunpack.c.l.b16 %v1966
    %v2163 = vunpack.c.l.b16 %v1967
    %v2164 = vunpack.c.l.b16 %v1968
    %v2165 = vunpack.c.l.b16 %v1969
    %v2166 = vunpack.c.l.b16 %v1970
    %v2167 = vunpack.c.l.b16 %v1971
    %v2168 = vunpack.c.l.b16 %v1972
    %v2169 = vunpack.c.l.b16 %v1973
    %v2170 = vunpack.c.l.b16 %v1974
    %v2171 = vunpack.c.l.b16 %v1975
    %v2172 = vunpack.c.l.b16 %v1976
    %v2173 = vunpack.c.l.b16 %v1977
    %v2174 = vunpack.c.l.b16 %v1978
    %v2175 = vunpack.c.l.b16 %v1979
    %v2176 = vunpack.c.l.b16 %v1980
    %v2177 = vunpack.c.l.b16 %v1981
    %v2178 = vunpack.c.l.b16 %v1982
    %v2179 = vunpack.c.l.b16 %v1983
    %v2180 = vunpack.c.l.b16 %v1984
    %v2181 = vunpack.c.l.b16 %v1985
    %v2182 = vunpack.c.l.b16 %v1986
    %v2183 = vunpack.c.l.b16 %v1987
    %v2184 = vunpack.c.l.b16 %v1988
    %v2185 = vunpack.c.l.b16 %v1989
    %v2186 = vunpack.c.l.b16 %v1990
    %v2187 = vunpack.c.l.b16 %v1991
    %v2188 = vunpack.c.l.b16 %v1992
    %v2189 = vunpack.c.l.b16 %v1993
    %v2190 = vunpack.c.l.b16 %v1994
    %v2191 = vunpack.c.l.b16 %v1995
    %v2192 = vunpack.c.l.b16 %v1996
    %v2193 = vunpack.c.l.b16 %v1997
    %v2194 = vunpack.c.l.b16 %v1998
    %v2195 = vunpack.c.l.b16 %v1999
    %v2196 = vunpack.c.l.b16 %v2000
    %v2197 = vunpack.c.l.b16 %v2001
    %v2198 = vunpack.c.l.b16 %v2002
    %v2199 = vunpack.c.l.b16 %v2003
    %v2200 = vunpack.c.l.b16 %v2004
    %v2201 = vunpack.c.l.b16 %v2005
    %v2202 = vunpack.c.l.b16 %v2006
    %v2203 = vunpack.c.l.b16 %v2007
    %v2204 = vunpack.c.l.b16 %v2008
    %v2205 = vunpack.c.l.b16 %v2009
    %v2206 = vunpack.c.l.b16 %v2010
    %v2207 = vunpack.c.l.b16 %v2011
    %v2208 = vunpack.c.l.b16 %v2012
    %v2209 = vunpack.c.l.b16 %v2013
    %v2210 = vunpack.c.l.b16 %v2014
    %v2211 = vunpack.c.l.b16 %v2015
    %v2212 = vunpack.c.l.b16 %v2016
    %v2213 = vunpack.c.l.b16 %v2017
    %v2214 = vunpack.c.l.b16 %v2018
    %v2215 = vunpack.c.l.b16 %v2019
    %v2216 = vunpack.c.l.b16 %v2020
    %v2217 = vunpack.c.l.b16 %v2021
    %v2218 = vunpack.c.l.b16 %v2022
    %v2219 = vunpack.c.l.b16 %v2023
    %v2220 = vunpack.c.l.b16 %v2024
    %v2221 = vunpack.c.l.b16 %v2025
    %v2222 = vunpack.c.l.b16 %v2026
    %v2223 = vunpack.c.l.b16 %v2027
    %v2224 = vunpack.c.l.b16 %v2028
    %v2225 = vunpack.c.l.b16 %v2029
    %v2226 = vunpack.c.l.b16 %v2030
    %v2227 = vpack.c.b16 %v2130, %v2129
    %v2228 = vpack.c.b16 %v2132, %v2131
    %v2229 = vpack.c.b16 %v2134, %v2133
    %v2230 = vpack.c.b16 %v2136, %v2135
    %v2231 = vpack.c.b16 %v2138, %v2137
    %v2232 = vpack.c.b16 %v2140, %v2139
    %v2233 = vpack.c.b16 %v2142, %v2141
    %v2234 = vpack.c.b16 %v2144, %v2143
    %v2235 = vpack.c.b16 %v2146, %v2145
    %v2236 = vpack.c.b16 %v2148, %v2147
    %v2237 = vpack.c.b16 %v2150, %v2149
    %v2238 = vpack.c.b16 %v2152, %v2151
    %v2239 = vpack.c.b16 %v2154, %v2153
    %v2240 = vpack.c.b16 %v2156, %v2155
    %v2241 = vpack.c.b16 %v2158, %v2157
    %v2242 = vpack.c.b16 %v2160, %v2159
    %v2243 = vpack.c.b16 %v2162, %v2161
    %v2244 = vpack.c.b16 %v2164, %v2163
    %v2245 = vpack.c.b16 %v2166, %v2165
    %v2246 = vpack.c.b16 %v2168, %v2167
    %v2247 = vpack.c.b16 %v2170, %v2169
    %v2248 = vpack.c.b16 %v2172, %v2171
    %v2249 = vpack.c.b16 %v2174, %v2173
    %v2250 = vpack.c.b16 %v2176, %v2175
    %v2251 = vpack.c.b16 %v2178, %v2177
    %v2252 = vpack.c.b16 %v2180, %v2179
    %v2253 = vpack.c.b16 %v2182, %v2181
    %v2254 = vpack.c.b16 %v2184, %v2183
    %v2255 = vpack.c.b16 %v2186, %v2185
    %v2256 = vpack.c.b16 %v2188, %v2187
    %v2257 = vpack.c.b16 %v2190, %v2189
    %v2258 = vpack.c.b16 %v2192, %v2191
    %v2259 = vpack.c.b16 %v2194, %v2193
    %v2260 = vpack.c.b16 %v2196, %v2195
    %v2261 = vpack.c.b16 %v2198, %v2197
    %v2262 = vpack.c.b16 %v2200, %v2199
    %v2263 = vpack.c.b16 %v2202, %v2201
    %v2264 = vpack.c.b16 %v2204, %v2203
    %v2265 = vpack.c.b16 %v2206, %v2205
    %v2266 = vpack.c.b16 %v2208, %v2207
    %v2267 = vpack.c.b16 %v2210, %v2209
    %v2268 = vpack.c.b16 %v2212, %v2211
    %v2269 = vpack.c.b16 %v2214, %v2213
    %v2270 = vpack.c.b16 %v2216, %v2215
    %v2271 = vpack.c.b16 %v2218, %v2217
    %v2272 = vpack.c.b16 %v2220, %v2219
    %v2273 = vpack.c.b16 %v2222, %v2221
    %v2274 = vpack.c.b16 %v2224, %v2223
    %v2275 = vpack.c.b16 %v2226, %v2225
    %v2326 = vsel %vm500, %v1931, 0
    %2328 = vmatprep.subr.bf16.mxu0 0
    %2329 = vmatpush1.bf16.msra.mxu0 %v2227
    %2330 = vmatprep.subr.bf16.mxu0 0
    %2331 = vmatpush1.bf16.msra.mxu0 %v2228
    %2332 = vmatprep.subr.bf16.mxu0 0
    %2333 = vmatpush1.bf16.msra.mxu0 %v2229
    %2334 = vmatprep.subr.bf16.mxu0 0
    %2335 = vmatpush1.bf16.msra.mxu0 %v2230
    %2336 = vmatprep.subr.bf16.mxu0 0
    %2337 = vmatpush1.bf16.msra.mxu0 %v2231
    %2338 = vmatprep.subr.bf16.mxu0 0
    %2339 = vmatpush1.bf16.msra.mxu0 %v2232
    %2340 = vmatprep.subr.bf16.mxu0 0
    %2341 = vmatpush1.bf16.msra.mxu0 %v2233
    %2342 = vmatprep.subr.bf16.mxu0 0
    %2343 = vmatpush1.bf16.msra.mxu0 %v2234
    %2344 = vmatprep.subr.bf16.mxu0 0
    %2345 = vmatpush1.bf16.msra.mxu0 %v2235
    %2346 = vmatprep.subr.bf16.mxu0 0
    %2347 = vmatpush1.bf16.msra.mxu0 %v2236
    %2348 = vmatprep.subr.bf16.mxu0 0
    %2349 = vmatpush1.bf16.msra.mxu0 %v2237
    %2350 = vmatprep.subr.bf16.mxu0 0
    %2351 = vmatpush1.bf16.msra.mxu0 %v2238
    %2352 = vmatprep.subr.bf16.mxu0 0
    %2353 = vmatpush1.bf16.msra.mxu0 %v2239
    %2354 = vmatprep.subr.bf16.mxu0 0
    %2355 = vmatpush1.bf16.msra.mxu0 %v2240
    %2356 = vmatprep.subr.bf16.mxu0 0
    %2357 = vmatpush1.bf16.msra.mxu0 %v2241
    %2358 = vmatprep.subr.bf16.mxu0 0
    %2359 = vmatpush1.bf16.msra.mxu0 %v2242
    %2360 = vmatprep.mubr.bf16.mxu0 %v1926
    %2361 = vmatmul.mubr.bf16.gmra.mrb[0].mxu0 %v1925
    %v2362 = vpop.f32.mrb[0].mxu0
    %v2363 = vadd.f32 0.0, %v2362
    %v2364 = vpop.f32.mrb[0].mxu0
    %v2365 = vpop.f32.mrb[0].mxu0
    %v2366 = vpop.f32.mrb[0].mxu0
    %2367 = vdwg.mxu0
    %2368 = vmatprep.subr.bf16.mxu0 0
    %2369 = vmatpush1.bf16.msra.mxu0 %v2243
    %2370 = vmatprep.subr.bf16.mxu0 0
    %2371 = vmatpush1.bf16.msra.mxu0 %v2244
    %2372 = vmatprep.subr.bf16.mxu0 0
    %2373 = vmatpush1.bf16.msra.mxu0 %v2245
    %2374 = vmatprep.subr.bf16.mxu0 0
    %2375 = vmatpush1.bf16.msra.mxu0 %v2246
    %2376 = vmatprep.subr.bf16.mxu0 0
    %2377 = vmatpush1.bf16.msra.mxu0 %v2247
    %2378 = vmatprep.subr.bf16.mxu0 0
    %2379 = vmatpush1.bf16.msra.mxu0 %v2248
    %2380 = vmatprep.subr.bf16.mxu0 0
    %2381 = vmatpush1.bf16.msra.mxu0 %v2249
    %2382 = vmatprep.subr.bf16.mxu0 0
    %2383 = vmatpush1.bf16.msra.mxu0 %v2250
    %2384 = vmatprep.subr.bf16.mxu0 0
    %2385 = vmatpush1.bf16.msra.mxu0 %v2251
    %2386 = vmatprep.subr.bf16.mxu0 0
    %2387 = vmatpush1.bf16.msra.mxu0 %v2252
    %2388 = vmatprep.subr.bf16.mxu0 0
    %2389 = vmatpush1.bf16.msra.mxu0 %v2253
    %2390 = vmatprep.subr.bf16.mxu0 0
    %2391 = vmatpush1.bf16.msra.mxu0 %v2254
    %2392 = vmatprep.subr.bf16.mxu0 0
    %2393 = vmatpush1.bf16.msra.mxu0 %v2255
    %2394 = vmatprep.subr.bf16.mxu0 0
    %2395 = vmatpush1.bf16.msra.mxu0 %v2256
    %2396 = vmatprep.subr.bf16.mxu0 0
    %2397 = vmatpush1.bf16.msra.mxu0 %v2257
    %2398 = vmatprep.subr.bf16.mxu0 0
    %2399 = vmatpush1.bf16.msra.mxu0 %v2258
    %2400 = vmatprep.mubr.bf16.mxu0 %v1928
    %2401 = vmatmul.mubr.bf16.gmra.mrb[0].mxu0 %v1927
    %v2402 = vpop.f32.mrb[0].mxu0
    %v2403 = vadd.f32 %v2363, %v2402
    %v2404 = vpop.f32.mrb[0].mxu0
    %v2405 = vpop.f32.mrb[0].mxu0
    %v2406 = vpop.f32.mrb[0].mxu0
    %2407 = vdwg.mxu0
    %2408 = vmatprep.subr.bf16.mxu0 0
    %2409 = vmatpush1.bf16.msra.mxu0 %v2259
    %2410 = vmatprep.subr.bf16.mxu0 0
    %2411 = vmatpush1.bf16.msra.mxu0 %v2260
    %2412 = vmatprep.subr.bf16.mxu0 0
    %2413 = vmatpush1.bf16.msra.mxu0 %v2261
    %2414 = vmatprep.subr.bf16.mxu0 0
    %2415 = vmatpush1.bf16.msra.mxu0 %v2262
    %2416 = vmatprep.subr.bf16.mxu0 0
    %2417 = vmatpush1.bf16.msra.mxu0 %v2263
    %2418 = vmatprep.subr.bf16.mxu0 0
    %2419 = vmatpush1.bf16.msra.mxu0 %v2264
    %2420 = vmatprep.subr.bf16.mxu0 0
    %2421 = vmatpush1.bf16.msra.mxu0 %v2265
    %2422 = vmatprep.subr.bf16.mxu0 0
    %2423 = vmatpush1.bf16.msra.mxu0 %v2266
    %2424 = vmatprep.subr.bf16.mxu0 0
    %2425 = vmatpush1.bf16.msra.mxu0 %v2267
    %2426 = vmatprep.subr.bf16.mxu0 0
    %2427 = vmatpush1.bf16.msra.mxu0 %v2268
    %2428 = vmatprep.subr.bf16.mxu0 0
    %2429 = vmatpush1.bf16.msra.mxu0 %v2269
    %2430 = vmatprep.subr.bf16.mxu0 0
    %2431 = vmatpush1.bf16.msra.mxu0 %v2270
    %2432 = vmatprep.subr.bf16.mxu0 0
    %2433 = vmatpush1.bf16.msra.mxu0 %v2271
    %2434 = vmatprep.subr.bf16.mxu0 0
    %2435 = vmatpush1.bf16.msra.mxu0 %v2272
    %2436 = vmatprep.subr.bf16.mxu0 0
    %2437 = vmatpush1.bf16.msra.mxu0 %v2273
    %2438 = vmatprep.subr.bf16.mxu0 0
    %2439 = vmatpush1.bf16.msra.mxu0 %v2274
    %2440 = vmatprep.mubr.bf16.mxu0 %v1930
    %2441 = vmatmul.mubr.bf16.gmra.mrb[0].mxu0 %v1929
    %v2442 = vpop.f32.mrb[0].mxu0
    %v2443 = vadd.f32 %v2403, %v2442
    %v2444 = vpop.f32.mrb[0].mxu0
    %v2445 = vpop.f32.mrb[0].mxu0
    %v2446 = vpop.f32.mrb[0].mxu0
    %2447 = vdwg.mxu0
    %2448 = vmatprep.subr.bf16.mxu0 0
    %2449 = vmatpush1.bf16.msra.mxu0 %v2275
    %2450 = vmatprep.subr.bf16.mxu0 0
    %2451 = vmatpush1.bf16.msra.mxu0 0
    %2452 = vmatprep.subr.bf16.mxu0 0
    %2453 = vmatpush1.bf16.msra.mxu0 0
    %2454 = vmatprep.subr.bf16.mxu0 0
    %2455 = vmatpush1.bf16.msra.mxu0 0
    %2456 = vmatprep.subr.bf16.mxu0 0
    %2457 = vmatpush1.bf16.msra.mxu0 0
    %2458 = vmatprep.subr.bf16.mxu0 0
    %2459 = vmatpush1.bf16.msra.mxu0 0
    %2460 = vmatprep.subr.bf16.mxu0 0
    %2461 = vmatpush1.bf16.msra.mxu0 0
    %2462 = vmatprep.subr.bf16.mxu0 0
    %2463 = vmatpush1.bf16.msra.mxu0 0
    %2464 = vmatprep.subr.bf16.mxu0 0
    %2465 = vmatpush1.bf16.msra.mxu0 0
    %2466 = vmatprep.subr.bf16.mxu0 0
    %2467 = vmatpush1.bf16.msra.mxu0 0
    %2468 = vmatprep.subr.bf16.mxu0 0
    %2469 = vmatpush1.bf16.msra.mxu0 0
    %2470 = vmatprep.subr.bf16.mxu0 0
    %2471 = vmatpush1.bf16.msra.mxu0 0
    %2472 = vmatprep.subr.bf16.mxu0 0
    %2473 = vmatpush1.bf16.msra.mxu0 0
    %2474 = vmatprep.subr.bf16.mxu0 0
    %2475 = vmatpush1.bf16.msra.mxu0 0
    %2476 = vmatprep.subr.bf16.mxu0 0
    %2477 = vmatpush1.bf16.msra.mxu0 0
    %2478 = vmatprep.subr.bf16.mxu0 0
    %2479 = vmatpush1.bf16.msra.mxu0 0
    %2480 = vmatprep.mubr.bf16.mxu0 0
    %2481 = vmatmul.mubr.bf16.gmra.mrb[0].mxu0 %v2326
    %v2482 = vpop.f32.mrb[0].mxu0
    %v2483 = vadd.f32 %v2443, %v2482
    %v2484 = vpop.f32.mrb[0].mxu0
    %v2485 = vpop.f32.mrb[0].mxu0
    %v2486 = vpop.f32.mrb[0].mxu0
    %2487 = vdwg.mxu0
    %v2488 = vadd.f32 %v1882, %v2483
    %vm2489 = vcmask 254976
    %v2490 = vsel %vm2489, %v2488, 0.0
    %2491 = vadd.xlane.f32.xlu0 %v2490
    %v2492 = vpop.xlane.xlu0 %2491
    %v2493 = vrcp.pop 32.0
    %v2494 = vmul.f32 %v2492, %v2493
    %v2495 = vsub.f32 %v2488, %v2494
    %v2496 = vmul.f32 %v2495, %v2495
    %v2497 = vsel %vm2489, %v2496, 0.0
    %2498 = vadd.xlane.f32.xlu0 %v2497
    %v2499 = vpop.xlane.xlu0 %2498
    %v2500 = vmul.f32 %v2499, %v2493
    %v2501 = vadd.f32 %v2500, 1e-05
    %v2502 = vrsqrt.pop %v2501
    %v2503 = vmul.f32 %v2495, %v2502
    %v2504 = vld [vmem:[%s3] sm:$0x1]
    %v2506 = vlaneseq
    %v2507 = vshrl.u32 %v2506, 7
    %v2508 = vsub.s32 0, %v2507
    %v2509 = vrot.slane %v2504, %v2508
    %v2511 = vmul.f32 %v2503, %v2509
    %v2512 = vld [vmem:[%s4] sm:$0x1]
    %v2514 = vlaneseq
    %v2515 = vshrl.u32 %v2514, 7
    %v2516 = vsub.s32 0, %v2515
    %v2517 = vrot.slane %v2512, %v2516
    %v2519 = vadd.f32 %v2511, %v2517
    %v2520 = vtanh.pop %v2519
    %v2521 = vadd.f32 %v2520, %v2520
    %v2522 = vmul.f32 %v2521, %v2520
    %v2523 = vsub.f32 %v2522, 1.0
    %v2524 = vmul.f32 %v2521, %v2523
    %v2525 = vsub.f32 %v2524, %v2520
    %v2526 = vmul.f32 %v2521, %v2525
    %v2527 = vsub.f32 %v2526, %v2523
    %2529 = vrot.lane.b32.xlu0 %v2523, 32
    %v2530 = vpop.permute.xlu0 %2529
    %2533 = vrot.lane.b32.xlu0 %v2525, 64
    %v2534 = vpop.permute.xlu0 %2533
    %2537 = vrot.lane.b32.xlu0 %v2527, 96
    %v2538 = vpop.permute.xlu0 %2537
    %vm2540 = vcmask 261120
    %v2541 = vsel %vm2540, %v2520, %v2530
    %vm2542 = vcmask 523264
    %v2543 = vsel %vm2542, %v2541, %v2534
    %vm2544 = vcmask 785408
    %v2545 = vsel %vm2544, %v2543, %v2538
    %v2546 = vpack.c.bf16 %v2545, %v2545
    %v2547 = vld [vmem:[%s6] sm:$0x1]
    %v2548 = vld [vmem:[%s5] sm:$0xf]
    %v2549 = vld [vmem:[%s5 + $0x4] sm:$0xf]
    %v2550 = vld [vmem:[%s5 + $0x8] sm:$0xf]
    %v2551 = vld [vmem:[%s5 + $0xc] sm:$0xf]
    %v2552 = vld [vmem:[%s5 + $0x10] sm:$0xf]
    %v2553 = vld [vmem:[%s5 + $0x14] sm:$0xf]
    %v2554 = vld [vmem:[%s5 + $0x18] sm:$0xf]
    %v2555 = vld [vmem:[%s5 + $0x1c] sm:$0xf]
    %v2556 = vld [vmem:[%s5 + $0x20] sm:$0xf]
    %v2557 = vld [vmem:[%s5 + $0x24] sm:$0xf]
    %v2558 = vld [vmem:[%s5 + $0x28] sm:$0xf]
    %v2559 = vld [vmem:[%s5 + $0x2c] sm:$0xf]
    %v2560 = vld [vmem:[%s5 + $0x30] sm:$0xf]
    %v2561 = vld [vmem:[%s5 + $0x34] sm:$0xf]
    %v2562 = vld [vmem:[%s5 + $0x38] sm:$0xf]
    %v2563 = vld [vmem:[%s5 + $0x3c] sm:$0xf]
    %v2580 = vunpack.c.l.b16 %v2548
    %v2581 = vunpack.c.l.b16 %v2549
    %v2582 = vunpack.c.l.b16 %v2550
    %v2583 = vunpack.c.l.b16 %v2551
    %v2584 = vunpack.c.l.b16 %v2552
    %v2585 = vunpack.c.l.b16 %v2553
    %v2586 = vunpack.c.l.b16 %v2554
    %v2587 = vunpack.c.l.b16 %v2555
    %v2588 = vunpack.c.l.b16 %v2556
    %v2589 = vunpack.c.l.b16 %v2557
    %v2590 = vunpack.c.l.b16 %v2558
    %v2591 = vunpack.c.l.b16 %v2559
    %v2592 = vunpack.c.l.b16 %v2560
    %v2593 = vunpack.c.l.b16 %v2561
    %v2594 = vunpack.c.l.b16 %v2562
    %v2595 = vunpack.c.l.b16 %v2563
    %v2596 = vpack.c.b16 %v2581, %v2580
    %v2597 = vpack.c.b16 %v2583, %v2582
    %v2598 = vpack.c.b16 %v2585, %v2584
    %v2599 = vpack.c.b16 %v2587, %v2586
    %v2600 = vpack.c.b16 %v2589, %v2588
    %v2601 = vpack.c.b16 %v2591, %v2590
    %v2602 = vpack.c.b16 %v2593, %v2592
    %v2603 = vpack.c.b16 %v2595, %v2594
    %2612 = vmatprep.subr.bf16.mxu0 0
    %2613 = vmatpush1.bf16.msra.mxu0 %v2596
    %2614 = vmatprep.subr.bf16.mxu0 0
    %2615 = vmatpush1.bf16.msra.mxu0 %v2597
    %2616 = vmatprep.subr.bf16.mxu0 0
    %2617 = vmatpush1.bf16.msra.mxu0 %v2598
    %2618 = vmatprep.subr.bf16.mxu0 0
    %2619 = vmatpush1.bf16.msra.mxu0 %v2599
    %2620 = vmatprep.subr.bf16.mxu0 0
    %2621 = vmatpush1.bf16.msra.mxu0 %v2600
    %2622 = vmatprep.subr.bf16.mxu0 0
    %2623 = vmatpush1.bf16.msra.mxu0 %v2601
    %2624 = vmatprep.subr.bf16.mxu0 0
    %2625 = vmatpush1.bf16.msra.mxu0 %v2602
    %2626 = vmatprep.subr.bf16.mxu0 0
    %2627 = vmatpush1.bf16.msra.mxu0 %v2603
    %2628 = vmatprep.subr.bf16.mxu0 0
    %2629 = vmatpush1.bf16.msra.mxu0 0
    %2630 = vmatprep.subr.bf16.mxu0 0
    %2631 = vmatpush1.bf16.msra.mxu0 0
    %2632 = vmatprep.subr.bf16.mxu0 0
    %2633 = vmatpush1.bf16.msra.mxu0 0
    %2634 = vmatprep.subr.bf16.mxu0 0
    %2635 = vmatpush1.bf16.msra.mxu0 0
    %2636 = vmatprep.subr.bf16.mxu0 0
    %2637 = vmatpush1.bf16.msra.mxu0 0
    %2638 = vmatprep.subr.bf16.mxu0 0
    %2639 = vmatpush1.bf16.msra.mxu0 0
    %2640 = vmatprep.subr.bf16.mxu0 0
    %2641 = vmatpush1.bf16.msra.mxu0 0
    %2642 = vmatprep.subr.bf16.mxu0 0
    %2643 = vmatpush1.bf16.msra.mxu0 0
    %2644 = vmatprep.mubr.bf16.mxu0 0
    %2645 = vmatmul.mubr.bf16.gmra.mrb[0].mxu0 %v2546
    %v2646 = vpop.f32.mrb[0].mxu0
    %v2647 = vadd.f32 0.0, %v2646
    %v2648 = vpop.f32.mrb[0].mxu0
    %v2649 = vpop.f32.mrb[0].mxu0
    %v2650 = vpop.f32.mrb[0].mxu0
    %2651 = vdwg.mxu0
    %v2653 = vlaneseq
    %v2654 = vshrl.u32 %v2653, 7
    %v2655 = vsub.s32 0, %v2654
    %v2656 = vrot.slane %v2547, %v2655
    %v2658 = vadd.f32 %v2656, %v2647
    %vm2659 = vcmask 123904
    %v2660 = vsel %vm2659, %v2658, 0.0
    %2661 = vadd.xlane.f32.xlu0 %v2660
    %v2662 = vpop.xlane.xlu0 %2661
    %v2663 = vrcp.pop 16.0
    %v2664 = vmul.f32 %v2662, %v2663
    %v2665 = vsub.f32 %v2658, %v2664
    %v2666 = vmul.f32 %v2665, %v2665
    %v2667 = vsel %vm2659, %v2666, 0.0
    %2668 = vadd.xlane.f32.xlu0 %v2667
    %v2669 = vpop.xlane.xlu0 %2668
    %v2670 = vmul.f32 %v2669, %v2663
    %v2671 = vadd.f32 %v2670, 1e-05
    %v2672 = vrsqrt.pop %v2671
    %v2673 = vmul.f32 %v2665, %v2672
    %v2674 = vld [vmem:[%s7] sm:$0x1]
    %v2676 = vlaneseq
    %v2677 = vshrl.u32 %v2676, 7
    %v2678 = vsub.s32 0, %v2677
    %v2679 = vrot.slane %v2674, %v2678
    %v2681 = vmul.f32 %v2673, %v2679
    %v2682 = vld [vmem:[%s8] sm:$0x1]
    %v2684 = vlaneseq
    %v2685 = vshrl.u32 %v2684, 7
    %v2686 = vsub.s32 0, %v2685
    %v2687 = vrot.slane %v2682, %v2686
    %v2689 = vadd.f32 %v2681, %v2687
    %v2690 = vtanh.pop %v2689
    %v2691 = vadd.f32 %v2690, %v2690
    %v2692 = vmul.f32 %v2691, %v2690
    %v2693 = vsub.f32 %v2692, 1.0
    %v2694 = vmul.f32 %v2691, %v2693
    %v2695 = vsub.f32 %v2694, %v2690
    %v2696 = vmul.f32 %v2691, %v2695
    %v2697 = vsub.f32 %v2696, %v2693
    %2699 = vrot.lane.b32.xlu0 %v2693, 16
    %v2700 = vpop.permute.xlu0 %2699
    %2703 = vrot.lane.b32.xlu0 %v2695, 32
    %v2704 = vpop.permute.xlu0 %2703
    %2707 = vrot.lane.b32.xlu0 %v2697, 48
    %v2708 = vpop.permute.xlu0 %2707
    %v2710 = vsel %vm500, %v2690, %v2700
    %v2711 = vsel %vm2540, %v2710, %v2704
    %vm2712 = vcmask 392192
    %v2713 = vsel %vm2712, %v2711, %v2708
    %v2714 = vpack.c.bf16 %v2713, %v2713
    %v2715 = vld [vmem:[%s10] sm:$0x1]
    %v2716 = vld [vmem:[%s9] sm:$0xf]
    %v2717 = vld [vmem:[%s9 + $0x4] sm:$0xf]
    %v2718 = vld [vmem:[%s9 + $0x8] sm:$0xf]
    %v2719 = vld [vmem:[%s9 + $0xc] sm:$0xf]
    %v2720 = vld [vmem:[%s9 + $0x10] sm:$0xf]
    %v2721 = vld [vmem:[%s9 + $0x14] sm:$0xf]
    %v2722 = vld [vmem:[%s9 + $0x18] sm:$0xf]
    %v2723 = vld [vmem:[%s9 + $0x1c] sm:$0xf]
    %v2732 = vunpack.c.l.b16 %v2716
    %v2733 = vunpack.c.l.b16 %v2717
    %v2734 = vunpack.c.l.b16 %v2718
    %v2735 = vunpack.c.l.b16 %v2719
    %v2736 = vunpack.c.l.b16 %v2720
    %v2737 = vunpack.c.l.b16 %v2721
    %v2738 = vunpack.c.l.b16 %v2722
    %v2739 = vunpack.c.l.b16 %v2723
    %v2740 = vpack.c.b16 %v2733, %v2732
    %v2741 = vpack.c.b16 %v2735, %v2734
    %v2742 = vpack.c.b16 %v2737, %v2736
    %v2743 = vpack.c.b16 %v2739, %v2738
    %v2749 = vsel %vm2542, %v2714, 0
    %2751 = vmatprep.subr.bf16.mxu0 0
    %2752 = vmatpush1.bf16.msra.mxu0 %v2740
    %2753 = vmatprep.subr.bf16.mxu0 0
    %2754 = vmatpush1.bf16.msra.mxu0 %v2741
    %2755 = vmatprep.subr.bf16.mxu0 0
    %2756 = vmatpush1.bf16.msra.mxu0 %v2742
    %2757 = vmatprep.subr.bf16.mxu0 0
    %2758 = vmatpush1.bf16.msra.mxu0 %v2743
    %2759 = vmatprep.subr.bf16.mxu0 0
    %2760 = vmatpush1.bf16.msra.mxu0 0
    %2761 = vmatprep.subr.bf16.mxu0 0
    %2762 = vmatpush1.bf16.msra.mxu0 0
    %2763 = vmatprep.subr.bf16.mxu0 0
    %2764 = vmatpush1.bf16.msra.mxu0 0
    %2765 = vmatprep.subr.bf16.mxu0 0
    %2766 = vmatpush1.bf16.msra.mxu0 0
    %2767 = vmatprep.subr.bf16.mxu0 0
    %2768 = vmatpush1.bf16.msra.mxu0 0
    %2769 = vmatprep.subr.bf16.mxu0 0
    %2770 = vmatpush1.bf16.msra.mxu0 0
    %2771 = vmatprep.subr.bf16.mxu0 0
    %2772 = vmatpush1.bf16.msra.mxu0 0
    %2773 = vmatprep.subr.bf16.mxu0 0
    %2774 = vmatpush1.bf16.msra.mxu0 0
    %2775 = vmatprep.subr.bf16.mxu0 0
    %2776 = vmatpush1.bf16.msra.mxu0 0
    %2777 = vmatprep.subr.bf16.mxu0 0
    %2778 = vmatpush1.bf16.msra.mxu0 0
    %2779 = vmatprep.subr.bf16.mxu0 0
    %2780 = vmatpush1.bf16.msra.mxu0 0
    %2781 = vmatprep.subr.bf16.mxu0 0
    %2782 = vmatpush1.bf16.msra.mxu0 0
    %2783 = vmatprep.mubr.bf16.mxu0 0
    %2784 = vmatmul.mubr.bf16.gmra.mrb[0].mxu0 %v2749
    %v2785 = vpop.f32.mrb[0].mxu0
    %v2786 = vadd.f32 0.0, %v2785
    %v2787 = vpop.f32.mrb[0].mxu0
    %v2788 = vpop.f32.mrb[0].mxu0
    %v2789 = vpop.f32.mrb[0].mxu0
    %2790 = vdwg.mxu0
    %v2792 = vlaneseq
    %v2793 = vshrl.u32 %v2792, 7
    %v2794 = vsub.s32 0, %v2793
    %v2795 = vrot.slane %v2715, %v2794
    %v2797 = vadd.f32 %v2795, %v2786
    %vm2798 = vcmask 74752
    %2799 = vst.msk [vmem:[#allocation2] sm:$0x3] %vm2798, %v2797
    // Predicated region
    $region46: #{simple1d_demo_kacn.1} parent=1 // pred_check
      _
    $region47: #{simple1d_demo_kacn.1} parent=1 // pred_check_branch
      %2801 = sbr.rel (0) target = $region49
    $region48: #{simple1d_demo_kacn.1} parent=1 // pred_region
      %s2803 = ssub.s32 32, 32
      %2804 = vsyncadd [#allocation3], %s2803
      %s2806 = sshll.u32 [#allocation2], 4
      %s2807 = int_to_ptr.vmem [resolvable:$true] %s2806
      %2809 = dma.vmem_to_hbm [thread:$0]  %s2807, 32, %s11, [#allocation3]
    $region49: #{simple1d_demo_kacn.1} parent=1 // pred_fallthru
      _
    // Predicated region
    $region50: #{simple1d_demo_kacn.1} parent=1 // pred_check
      _
    $region51: #{simple1d_demo_kacn.1} parent=1 // pred_check_branch
      %2811 = sbr.rel (0) target = $region53
    $region52: #{simple1d_demo_kacn.1} parent=1 // pred_region
      %2812 = dma.done [#allocation3], 32
    $region53: #{simple1d_demo_kacn.1} parent=1 // pred_fallthru
      _
    %2813 = vsyncpa [#allocation3], 1

</llo_original>
